<compile_context>
chip_gen: v7x
topology: tpu7x:2x2x1
jax: 0.10.0
libtpu: 0.0.40
codegen_flags: <defaults>
</compile_context>

<pallas_src>
import functools

import numpy as np

import jax
import jax.numpy as jnp
from jax.experimental import pallas as pl
from jax.experimental.pallas import tpu as pltpu

EPS = 1e-5


def resnet_block_kernel(x_ref, sdn_ref, sup_ref, csel_ref,
                        wb1_ref, b1_ref, g1_ref, be1_ref,
                        wb2_ref, b2_ref, g2_ref, be2_ref,
                        o_ref, *, channels):
    M, L = x_ref.shape                       # M = N*H, L = W*C (lane-dense)
    width = L // channels
    inv_count = 1.0 / float(M * width)       # elements per channel (N*H*W)

    x2 = x_ref[...]                          # (M, L)
    sdn = sdn_ref[...]                       # (M, M) 0/1: row i <- row i-1 (0 at image top)
    sup = sup_ref[...]                       # (M, M) 0/1: row i <- row i+1 (0 at image bottom)
    csel = csel_ref[...]                     # (L, L) 0/1: csel[i, j] = (i % C == j % C)

    def conv3x3(v, wb_ref, b_ref):
        # kw taps + W-direction zero padding are baked into the banded weights
        # (K = W*Cin per matmul); kh taps come from the row-shifted adds below.
        m0 = jnp.dot(v, wb_ref[0], preferred_element_type=jnp.float32)
        m1 = jnp.dot(v, wb_ref[1], preferred_element_type=jnp.float32)
        m2 = jnp.dot(v, wb_ref[2], preferred_element_type=jnp.float32)
        y = (m1
             + jnp.dot(sdn, m0, preferred_element_type=jnp.float32)
             + jnp.dot(sup, m2, preferred_element_type=jnp.float32))
        return y + b_ref[...]                # per-lane (already channel-tiled) bias

    def batchnorm(y, g_ref, be_ref):
        # Single-pass training-mode stats: per-channel sum / sum-of-squares,
        # tiled back to all W*C lanes with one 0/1 selector matmul
        # (no lane-sparse reshapes, var = E[x^2] - mean^2, rsqrt on EUP).
        s = jnp.sum(y, axis=0, keepdims=True)              # (1, L)
        ss = jnp.sum(y * y, axis=0, keepdims=True)         # (1, L)
        mean = jnp.dot(s, csel, preferred_element_type=jnp.float32) * inv_count
        ex2 = jnp.dot(ss, csel, preferred_element_type=jnp.float32) * inv_count
        inv_std = jax.lax.rsqrt(ex2 - mean * mean + EPS)   # (1, L)
        scale = g_ref[...] * inv_std
        shift = be_ref[...] - mean * scale
        return y * scale + shift

    # conv1 -> bn1 -> relu
    y = conv3x3(x2, wb1_ref, b1_ref)
    y = jnp.maximum(batchnorm(y, g1_ref, be1_ref), 0.0)
    # conv2 -> bn2
    y = conv3x3(y, wb2_ref, b2_ref)
    y = batchnorm(y, g2_ref, be2_ref)
    # residual add (identity_downsample is None) + relu; lane-dense full store
    o_ref[...] = jnp.maximum(y + x2, 0.0)


# ---------- wrapper-side constant builders (static numpy, constant-folded) ----------

def _band_selector(width):
    """S[dx, xi, xo] = 1 if xi == xo + dx - 1 (valid tap), else 0."""
    s = np.zeros((3, width, width), np.float32)
    for dx in range(3):
        for xo in range(width):
            xi = xo + dx - 1
            if 0 <= xi < width:
                s[dx, xi, xo] = 1.0
    return s


def _row_shift_mats(n, h):
    """Per-image row shift matrices over the flattened (N*H) row axis."""
    m = n * h
    dn = np.zeros((m, m), np.float32)
    up = np.zeros((m, m), np.float32)
    for img in range(n):
        for i in range(h):
            r = img * h + i
            if i > 0:
                dn[r, r - 1] = 1.0       # pulls row above (zero at top edge)
            if i < h - 1:
                up[r, r + 1] = 1.0       # pulls row below (zero at bottom edge)
    return dn, up


def _channel_selector(width, channels):
    """csel[i, j] = 1 if lane i and lane j carry the same channel."""
    lanes = width * channels
    ch = np.arange(lanes) % channels
    return (ch[:, None] == ch[None, :]).astype(np.float32)


def _band_weights(w9, width):
    """(9, Cin, Cout) conv taps -> (3, W*Cin, W*Cout) banded matmul operands."""
    cin, cout = w9.shape[1], w9.shape[2]
    w4 = w9.reshape(3, 3, cin, cout)                       # (dy, dx, ci, co)
    sel = jnp.asarray(_band_selector(width))               # (dx, xi, xo)
    wb = jnp.einsum("dio,ydcf->yicof", sel, w4)            # (dy, xi, ci, xo, co)
    return wb.reshape(3, width * cin, width * cout)


@jax.jit
def block_forward(x_nchw, params):
    """x_nchw: (N, C, H, W) float32, PyTorch layout. Returns same layout."""
    n, c, h, w = x_nchw.shape
    cout = params["w1"].shape[-1]
    assert params["w1"].shape[1] == c and cout == c, \
        "identity residual requires stride=1 and in_channels == out_channels"
    lanes = w * c
    m = n * h

    # Lane-dense activation layout: (N*H, W*C). Only the unavoidable
    # NCHW<->NHWC transposes remain in the wrapper; no jnp.pad HBM pass.
    x2 = jnp.transpose(x_nchw, (0, 2, 3, 1)).reshape(m, lanes)

    wb1 = _band_weights(params["w1"], w)
    wb2 = _band_weights(params["w2"], w)
    sdn, sup = _row_shift_mats(n, h)
    csel = _channel_selector(w, c)

    def lane_tile(v):                      # per-channel (C,) -> per-lane (1, W*C)
        return jnp.tile(v, w).reshape(1, lanes)

    vspec = pl.BlockSpec(memory_space=pltpu.MemorySpace.VMEM)
    # TODO(synk): at realistic ResNet sizes, tile the N*H row axis with a grid
    # ("parallel" dimension_semantics for megacore) and switch BatchNorm to a
    # two-pass partial-sum scheme; at these test shapes everything fits in VMEM
    # so a single grid-less call is used.  bf16 matmul operands would add
    # another ~2-4x on the MXU phase if the accuracy budget allows.
    out2 = pl.pallas_call(
        functools.partial(resnet_block_kernel, channels=c),
        out_shape=jax.ShapeDtypeStruct((m, lanes), jnp.float32),
        in_specs=[vspec] * 12,
        out_specs=vspec,
        compiler_params=pltpu.CompilerParams(vmem_limit_bytes=48 * 1024 * 1024),
    )(x2, jnp.asarray(sdn), jnp.asarray(sup), jnp.asarray(csel),
      wb1, lane_tile(params["b1"]), lane_tile(params["g1"]), lane_tile(params["be1"]),
      wb2, lane_tile(params["b2"]), lane_tile(params["g2"]), lane_tile(params["be2"]))

    return jnp.transpose(out2.reshape(n, h, w, c), (0, 3, 1, 2))   # -> NCHW


def reference_forward(x_nchw, params):
    """Pure-JAX reference (same math) for a correctness check."""
    def conv(x, w9, b):
        wgt = w9.reshape(3, 3, w9.shape[1], w9.shape[2])          # HWIO
        y = jax.lax.conv_general_dilated(
            x, wgt, window_strides=(1, 1), padding="SAME",
            dimension_numbers=("NHWC", "HWIO", "NHWC"),
            precision=jax.lax.Precision.HIGHEST)
        return y + b.reshape(1, 1, 1, -1)

    def bn(y, g, be):
        mean = jnp.mean(y, axis=(0, 1, 2), keepdims=True)
        var = jnp.mean((y - mean) ** 2, axis=(0, 1, 2), keepdims=True)
        return (y - mean) * jax.lax.rsqrt(var + EPS) * g.reshape(1, 1, 1, -1) \
            + be.reshape(1, 1, 1, -1)

    x = jnp.transpose(x_nchw, (0, 2, 3, 1))
    y = jnp.maximum(bn(conv(x, params["w1"], params["b1"]),
                       params["g1"], params["be1"]), 0.0)
    y = bn(conv(y, params["w2"], params["b2"]), params["g2"], params["be2"])
    y = jnp.maximum(y + x, 0.0)
    return jnp.transpose(y, (0, 3, 1, 2))


def init_params(key, cin, cout):
    k1, k2, k3, k4 = jax.random.split(key, 4)
    return {
        "w1": jax.random.normal(k1, (9, cin, cout), jnp.float32) * 0.1,
        "b1": jax.random.normal(k2, (cout,), jnp.float32) * 0.1,
        "g1": jnp.ones((cout,), jnp.float32),
        "be1": jnp.zeros((cout,), jnp.float32),
        "w2": jax.random.normal(k3, (9, cout, cout), jnp.float32) * 0.1,
        "b2": jax.random.normal(k4, (cout,), jnp.float32) * 0.1,
        "g2": jnp.ones((cout,), jnp.float32),
        "be2": jnp.zeros((cout,), jnp.float32),
    }


if __name__ == "__main__":
    key = jax.random.PRNGKey(0)
    kx, kp = jax.random.split(key)

    # in_channels == out_channels, W*C = 128 (perfect lane width)
    N, C, H, W = 2, 8, 16, 16
    x = jax.random.normal(kx, (N, C, H, W), jnp.float32)
    params = init_params(kp, C, C)

    out = jax.block_until_ready(block_forward(x, params))
    ref = jax.block_until_ready(reference_forward(x, params))

    assert out.shape == (N, C, H, W)
    err = float(jnp.max(jnp.abs(out - ref)))
    assert err < 1e-3, f"max abs err {err}"

    print("KERNEL_OK")
</pallas_src>

<mosaic_0001>
module attributes {stable_mosaic.version = 11 : i64} {
  func.func @resnet_block_kernel(%arg0: memref<32x128xf32, #tpu.memory_space<vmem>>, %arg1: memref<32x32xf32, #tpu.memory_space<vmem>>, %arg2: memref<32x32xf32, #tpu.memory_space<vmem>>, %arg3: memref<128x128xf32, #tpu.memory_space<vmem>>, %arg4: memref<3x128x128xf32, #tpu.memory_space<vmem>>, %arg5: memref<1x128xf32, #tpu.memory_space<vmem>>, %arg6: memref<1x128xf32, #tpu.memory_space<vmem>>, %arg7: memref<1x128xf32, #tpu.memory_space<vmem>>, %arg8: memref<3x128x128xf32, #tpu.memory_space<vmem>>, %arg9: memref<1x128xf32, #tpu.memory_space<vmem>>, %arg10: memref<1x128xf32, #tpu.memory_space<vmem>>, %arg11: memref<1x128xf32, #tpu.memory_space<vmem>>, %arg12: memref<32x128xf32, #tpu.memory_space<vmem>>) attributes {dimension_semantics = [], scalar_prefetch = 0 : i64, scratch_operands = 0 : i64, tpu.core_type = #tpu.core_type<tc>} {
    %c0 = arith.constant 0 : index
    %c0_0 = arith.constant 0 : index
    %0 = vector.load %arg0[%c0, %c0_0] : memref<32x128xf32, #tpu.memory_space<vmem>>, vector<32x128xf32>
    %c0_1 = arith.constant 0 : index
    %c0_2 = arith.constant 0 : index
    %1 = vector.load %arg1[%c0_1, %c0_2] : memref<32x32xf32, #tpu.memory_space<vmem>>, vector<32x32xf32>
    %c0_3 = arith.constant 0 : index
    %c0_4 = arith.constant 0 : index
    %2 = vector.load %arg2[%c0_3, %c0_4] : memref<32x32xf32, #tpu.memory_space<vmem>>, vector<32x32xf32>
    %c0_5 = arith.constant 0 : index
    %c0_6 = arith.constant 0 : index
    %3 = vector.load %arg3[%c0_5, %c0_6] : memref<128x128xf32, #tpu.memory_space<vmem>>, vector<128x128xf32>
    %c0_7 = arith.constant 0 : index
    %c0_8 = arith.constant 0 : index
    %c0_9 = arith.constant 0 : index
    %4 = vector.load %arg4[%c0_7, %c0_8, %c0_9] : memref<3x128x128xf32, #tpu.memory_space<vmem>>, vector<1x128x128xf32>
    %5 = vector.shape_cast %4 : vector<1x128x128xf32> to vector<128x128xf32>
    %cst = arith.constant dense<0.000000e+00> : vector<32x128xf32>
    %6 = tpu.matmul %0, %5, %cst {dimension_numbers = #tpu.dot_dimension_numbers<[1], [0], [0], [1], [0, 0, 1, 1], [], []>} : vector<32x128xf32>, vector<128x128xf32>, vector<32x128xf32> -> vector<32x128xf32>
    %c1 = arith.constant 1 : index
    %c0_10 = arith.constant 0 : index
    %c0_11 = arith.constant 0 : index
    %7 = vector.load %arg4[%c1, %c0_10, %c0_11] : memref<3x128x128xf32, #tpu.memory_space<vmem>>, vector<1x128x128xf32>
    %8 = vector.shape_cast %7 : vector<1x128x128xf32> to vector<128x128xf32>
    %cst_12 = arith.constant dense<0.000000e+00> : vector<32x128xf32>
    %9 = tpu.matmul %0, %8, %cst_12 {dimension_numbers = #tpu.dot_dimension_numbers<[1], [0], [0], [1], [0, 0, 1, 1], [], []>} : vector<32x128xf32>, vector<128x128xf32>, vector<32x128xf32> -> vector<32x128xf32>
    %c2 = arith.constant 2 : index
    %c0_13 = arith.constant 0 : index
    %c0_14 = arith.constant 0 : index
    %10 = vector.load %arg4[%c2, %c0_13, %c0_14] : memref<3x128x128xf32, #tpu.memory_space<vmem>>, vector<1x128x128xf32>
    %11 = vector.shape_cast %10 : vector<1x128x128xf32> to vector<128x128xf32>
    %cst_15 = arith.constant dense<0.000000e+00> : vector<32x128xf32>
    %12 = tpu.matmul %0, %11, %cst_15 {dimension_numbers = #tpu.dot_dimension_numbers<[1], [0], [0], [1], [0, 0, 1, 1], [], []>} : vector<32x128xf32>, vector<128x128xf32>, vector<32x128xf32> -> vector<32x128xf32>
    %cst_16 = arith.constant dense<0.000000e+00> : vector<32x128xf32>
    %13 = tpu.matmul %1, %6, %cst_16 {dimension_numbers = #tpu.dot_dimension_numbers<[1], [0], [0], [1], [0, 0, 1, 1], [], []>} : vector<32x32xf32>, vector<32x128xf32>, vector<32x128xf32> -> vector<32x128xf32>
    %14 = arith.addf %9, %13 : vector<32x128xf32>
    %cst_17 = arith.constant dense<0.000000e+00> : vector<32x128xf32>
    %15 = tpu.matmul %2, %12, %cst_17 {dimension_numbers = #tpu.dot_dimension_numbers<[1], [0], [0], [1], [0, 0, 1, 1], [], []>} : vector<32x32xf32>, vector<32x128xf32>, vector<32x128xf32> -> vector<32x128xf32>
    %16 = arith.addf %14, %15 : vector<32x128xf32>
    %c0_18 = arith.constant 0 : index
    %c0_19 = arith.constant 0 : index
    %17 = vector.load %arg5[%c0_18, %c0_19] : memref<1x128xf32, #tpu.memory_space<vmem>>, vector<1x128xf32>
    %18 = vector.broadcast %17 : vector<1x128xf32> to vector<32x128xf32>
    %19 = arith.addf %16, %18 : vector<32x128xf32>
    %cst_20 = arith.constant dense<0.000000e+00> : vector<128xf32>
    %20 = vector.multi_reduction <add>, %19, %cst_20 [0] : vector<32x128xf32> to vector<128xf32>
    %21 = vector.shape_cast %20 : vector<128xf32> to vector<1x128xf32>
    %22 = arith.mulf %19, %19 : vector<32x128xf32>
    %cst_21 = arith.constant dense<0.000000e+00> : vector<128xf32>
    %23 = vector.multi_reduction <add>, %22, %cst_21 [0] : vector<32x128xf32> to vector<128xf32>
    %24 = vector.shape_cast %23 : vector<128xf32> to vector<1x128xf32>
    %cst_22 = arith.constant dense<0.000000e+00> : vector<1x128xf32>
    %25 = tpu.matmul %21, %3, %cst_22 {dimension_numbers = #tpu.dot_dimension_numbers<[1], [0], [0], [1], [0, 0, 1, 1], [], []>} : vector<1x128xf32>, vector<128x128xf32>, vector<1x128xf32> -> vector<1x128xf32>
    %cst_23 = arith.constant 0.001953125 : f32
    %26 = vector.broadcast %cst_23 : f32 to vector<1x128xf32>
    %27 = arith.mulf %25, %26 : vector<1x128xf32>
    %cst_24 = arith.constant dense<0.000000e+00> : vector<1x128xf32>
    %28 = tpu.matmul %24, %3, %cst_24 {dimension_numbers = #tpu.dot_dimension_numbers<[1], [0], [0], [1], [0, 0, 1, 1], [], []>} : vector<1x128xf32>, vector<128x128xf32>, vector<1x128xf32> -> vector<1x128xf32>
    %cst_25 = arith.constant 0.001953125 : f32
    %29 = vector.broadcast %cst_25 : f32 to vector<1x128xf32>
    %30 = arith.mulf %28, %29 : vector<1x128xf32>
    %31 = arith.mulf %27, %27 : vector<1x128xf32>
    %32 = arith.subf %30, %31 : vector<1x128xf32>
    %cst_26 = arith.constant 9.99999974E-6 : f32
    %33 = vector.broadcast %cst_26 : f32 to vector<1x128xf32>
    %34 = arith.addf %32, %33 : vector<1x128xf32>
    %35 = math.rsqrt %34 : vector<1x128xf32>
    %c0_27 = arith.constant 0 : index
    %c0_28 = arith.constant 0 : index
    %36 = vector.load %arg6[%c0_27, %c0_28] : memref<1x128xf32, #tpu.memory_space<vmem>>, vector<1x128xf32>
    %37 = arith.mulf %36, %35 : vector<1x128xf32>
    %c0_29 = arith.constant 0 : index
    %c0_30 = arith.constant 0 : index
    %38 = vector.load %arg7[%c0_29, %c0_30] : memref<1x128xf32, #tpu.memory_space<vmem>>, vector<1x128xf32>
    %39 = arith.mulf %27, %37 : vector<1x128xf32>
    %40 = arith.subf %38, %39 : vector<1x128xf32>
    %41 = vector.broadcast %37 : vector<1x128xf32> to vector<32x128xf32>
    %42 = arith.mulf %19, %41 : vector<32x128xf32>
    %43 = vector.broadcast %40 : vector<1x128xf32> to vector<32x128xf32>
    %44 = arith.addf %42, %43 : vector<32x128xf32>
    %cst_31 = arith.constant 0.000000e+00 : f32
    %45 = vector.broadcast %cst_31 : f32 to vector<32x128xf32>
    %46 = arith.maximumf %44, %45 : vector<32x128xf32>
    %c0_32 = arith.constant 0 : index
    %c0_33 = arith.constant 0 : index
    %c0_34 = arith.constant 0 : index
    %47 = vector.load %arg8[%c0_32, %c0_33, %c0_34] : memref<3x128x128xf32, #tpu.memory_space<vmem>>, vector<1x128x128xf32>
    %48 = vector.shape_cast %47 : vector<1x128x128xf32> to vector<128x128xf32>
    %cst_35 = arith.constant dense<0.000000e+00> : vector<32x128xf32>
    %49 = tpu.matmul %46, %48, %cst_35 {dimension_numbers = #tpu.dot_dimension_numbers<[1], [0], [0], [1], [0, 0, 1, 1], [], []>} : vector<32x128xf32>, vector<128x128xf32>, vector<32x128xf32> -> vector<32x128xf32>
    %c1_36 = arith.constant 1 : index
    %c0_37 = arith.constant 0 : index
    %c0_38 = arith.constant 0 : index
    %50 = vector.load %arg8[%c1_36, %c0_37, %c0_38] : memref<3x128x128xf32, #tpu.memory_space<vmem>>, vector<1x128x128xf32>
    %51 = vector.shape_cast %50 : vector<1x128x128xf32> to vector<128x128xf32>
    %cst_39 = arith.constant dense<0.000000e+00> : vector<32x128xf32>
    %52 = tpu.matmul %46, %51, %cst_39 {dimension_numbers = #tpu.dot_dimension_numbers<[1], [0], [0], [1], [0, 0, 1, 1], [], []>} : vector<32x128xf32>, vector<128x128xf32>, vector<32x128xf32> -> vector<32x128xf32>
    %c2_40 = arith.constant 2 : index
    %c0_41 = arith.constant 0 : index
    %c0_42 = arith.constant 0 : index
    %53 = vector.load %arg8[%c2_40, %c0_41, %c0_42] : memref<3x128x128xf32, #tpu.memory_space<vmem>>, vector<1x128x128xf32>
    %54 = vector.shape_cast %53 : vector<1x128x128xf32> to vector<128x128xf32>
    %cst_43 = arith.constant dense<0.000000e+00> : vector<32x128xf32>
    %55 = tpu.matmul %46, %54, %cst_43 {dimension_numbers = #tpu.dot_dimension_numbers<[1], [0], [0], [1], [0, 0, 1, 1], [], []>} : vector<32x128xf32>, vector<128x128xf32>, vector<32x128xf32> -> vector<32x128xf32>
    %cst_44 = arith.constant dense<0.000000e+00> : vector<32x128xf32>
    %56 = tpu.matmul %1, %49, %cst_44 {dimension_numbers = #tpu.dot_dimension_numbers<[1], [0], [0], [1], [0, 0, 1, 1], [], []>} : vector<32x32xf32>, vector<32x128xf32>, vector<32x128xf32> -> vector<32x128xf32>
    %57 = arith.addf %52, %56 : vector<32x128xf32>
    %cst_45 = arith.constant dense<0.000000e+00> : vector<32x128xf32>
    %58 = tpu.matmul %2, %55, %cst_45 {dimension_numbers = #tpu.dot_dimension_numbers<[1], [0], [0], [1], [0, 0, 1, 1], [], []>} : vector<32x32xf32>, vector<32x128xf32>, vector<32x128xf32> -> vector<32x128xf32>
    %59 = arith.addf %57, %58 : vector<32x128xf32>
    %c0_46 = arith.constant 0 : index
    %c0_47 = arith.constant 0 : index
    %60 = vector.load %arg9[%c0_46, %c0_47] : memref<1x128xf32, #tpu.memory_space<vmem>>, vector<1x128xf32>
    %61 = vector.broadcast %60 : vector<1x128xf32> to vector<32x128xf32>
    %62 = arith.addf %59, %61 : vector<32x128xf32>
    %cst_48 = arith.constant dense<0.000000e+00> : vector<128xf32>
    %63 = vector.multi_reduction <add>, %62, %cst_48 [0] : vector<32x128xf32> to vector<128xf32>
    %64 = vector.shape_cast %63 : vector<128xf32> to vector<1x128xf32>
    %65 = arith.mulf %62, %62 : vector<32x128xf32>
    %cst_49 = arith.constant dense<0.000000e+00> : vector<128xf32>
    %66 = vector.multi_reduction <add>, %65, %cst_49 [0] : vector<32x128xf32> to vector<128xf32>
    %67 = vector.shape_cast %66 : vector<128xf32> to vector<1x128xf32>
    %cst_50 = arith.constant dense<0.000000e+00> : vector<1x128xf32>
    %68 = tpu.matmul %64, %3, %cst_50 {dimension_numbers = #tpu.dot_dimension_numbers<[1], [0], [0], [1], [0, 0, 1, 1], [], []>} : vector<1x128xf32>, vector<128x128xf32>, vector<1x128xf32> -> vector<1x128xf32>
    %cst_51 = arith.constant 0.001953125 : f32
    %69 = vector.broadcast %cst_51 : f32 to vector<1x128xf32>
    %70 = arith.mulf %68, %69 : vector<1x128xf32>
    %cst_52 = arith.constant dense<0.000000e+00> : vector<1x128xf32>
    %71 = tpu.matmul %67, %3, %cst_52 {dimension_numbers = #tpu.dot_dimension_numbers<[1], [0], [0], [1], [0, 0, 1, 1], [], []>} : vector<1x128xf32>, vector<128x128xf32>, vector<1x128xf32> -> vector<1x128xf32>
    %cst_53 = arith.constant 0.001953125 : f32
    %72 = vector.broadcast %cst_53 : f32 to vector<1x128xf32>
    %73 = arith.mulf %71, %72 : vector<1x128xf32>
    %74 = arith.mulf %70, %70 : vector<1x128xf32>
    %75 = arith.subf %73, %74 : vector<1x128xf32>
    %cst_54 = arith.constant 9.99999974E-6 : f32
    %76 = vector.broadcast %cst_54 : f32 to vector<1x128xf32>
    %77 = arith.addf %75, %76 : vector<1x128xf32>
    %78 = math.rsqrt %77 : vector<1x128xf32>
    %c0_55 = arith.constant 0 : index
    %c0_56 = arith.constant 0 : index
    %79 = vector.load %arg10[%c0_55, %c0_56] : memref<1x128xf32, #tpu.memory_space<vmem>>, vector<1x128xf32>
    %80 = arith.mulf %79, %78 : vector<1x128xf32>
    %c0_57 = arith.constant 0 : index
    %c0_58 = arith.constant 0 : index
    %81 = vector.load %arg11[%c0_57, %c0_58] : memref<1x128xf32, #tpu.memory_space<vmem>>, vector<1x128xf32>
    %82 = arith.mulf %70, %80 : vector<1x128xf32>
    %83 = arith.subf %81, %82 : vector<1x128xf32>
    %84 = vector.broadcast %80 : vector<1x128xf32> to vector<32x128xf32>
    %85 = arith.mulf %62, %84 : vector<32x128xf32>
    %86 = vector.broadcast %83 : vector<1x128xf32> to vector<32x128xf32>
    %87 = arith.addf %85, %86 : vector<32x128xf32>
    %88 = arith.addf %87, %0 : vector<32x128xf32>
    %cst_59 = arith.constant 0.000000e+00 : f32
    %89 = vector.broadcast %cst_59 : f32 to vector<32x128xf32>
    %90 = arith.maximumf %88, %89 : vector<32x128xf32>
    %c0_60 = arith.constant 0 : index
    %c0_61 = arith.constant 0 : index
    %91 = vector.load %arg12[%c0_60, %c0_61] : memref<32x128xf32, #tpu.memory_space<vmem>>, vector<32x128xf32>
    tpu.vector_store %arg12[%c0_60, %c0_61], %90 {strides = array<i32>} : memref<32x128xf32, #tpu.memory_space<vmem>>, vector<32x128xf32>,
    return
  }
}

</mosaic_0001>

<llo_original>
// kernel: tile.34
$region0: #{tile.34}
  %s0 = inlined_call_operand.vmem [shape: f32[16,8], index: 0, kind: input, shape index: {}]
  %s1 = inlined_call_operand.vmem [shape: f32[1,128], index: 1, kind: output, shape index: {}]
  $region1: #{tile.34} parent=0
    #allocation0 [shape = 'u8[4096]{0}', space=vmem, size = 0x1000, scoped, tag = 'scoped mem for output reshape']
    %v2 = vld [vmem:[%s0] sm:$0x1]
    %vm3 = vcmask 64512
    %4 = vst.msk [vmem:[#allocation0] sm:$0x1] %vm3, %v2
    %s5 = scalar_lea.vmem %s0, 15
    %v6 = vld [vmem:[%s5] sm:$0x1]
    %7 = vrot.lane.b32.xlu0 %v6, 120
    %v8 = vpop.permute.xlu0 %7
    %vm9 = vcmask 1048512
    %10 = vst.msk [vmem:[#allocation0] sm:$0x1] %vm9, %v8
    %s11 = scalar_lea.vmem %s0, 14
    %v12 = vld [vmem:[%s11] sm:$0x1]
    %13 = vrot.lane.b32.xlu0 %v12, 112
    %v14 = vpop.permute.xlu0 %13
    %vm15 = vcmask 982912
    %16 = vst.msk [vmem:[#allocation0] sm:$0x1] %vm15, %v14
    %s17 = scalar_lea.vmem %s0, 13
    %v18 = vld [vmem:[%s17] sm:$0x1]
    %19 = vrot.lane.b32.xlu0 %v18, 104
    %v20 = vpop.permute.xlu0 %19
    %vm21 = vcmask 917312
    %22 = vst.msk [vmem:[#allocation0] sm:$0x1] %vm21, %v20
    %s23 = scalar_lea.vmem %s0, 12
    %v24 = vld [vmem:[%s23] sm:$0x1]
    %25 = vrot.lane.b32.xlu0 %v24, 96
    %v26 = vpop.permute.xlu0 %25
    %vm27 = vcmask 851712
    %28 = vst.msk [vmem:[#allocation0] sm:$0x1] %vm27, %v26
    %s29 = scalar_lea.vmem %s0, 11
    %v30 = vld [vmem:[%s29] sm:$0x1]
    %31 = vrot.lane.b32.xlu0 %v30, 88
    %v32 = vpop.permute.xlu0 %31
    %vm33 = vcmask 786112
    %34 = vst.msk [vmem:[#allocation0] sm:$0x1] %vm33, %v32
    %s35 = scalar_lea.vmem %s0, 10
    %v36 = vld [vmem:[%s35] sm:$0x1]
    %37 = vrot.lane.b32.xlu0 %v36, 80
    %v38 = vpop.permute.xlu0 %37
    %vm39 = vcmask 720512
    %40 = vst.msk [vmem:[#allocation0] sm:$0x1] %vm39, %v38
    %s41 = scalar_lea.vmem %s0, 9
    %v42 = vld [vmem:[%s41] sm:$0x1]
    %43 = vrot.lane.b32.xlu0 %v42, 72
    %v44 = vpop.permute.xlu0 %43
    %vm45 = vcmask 654912
    %46 = vst.msk [vmem:[#allocation0] sm:$0x1] %vm45, %v44
    %s47 = scalar_lea.vmem %s0, 8
    %v48 = vld [vmem:[%s47] sm:$0x1]
    %49 = vrot.lane.b32.xlu0 %v48, 64
    %v50 = vpop.permute.xlu0 %49
    %vm51 = vcmask 589312
    %52 = vst.msk [vmem:[#allocation0] sm:$0x1] %vm51, %v50
    %s53 = scalar_lea.vmem %s0, 7
    %v54 = vld [vmem:[%s53] sm:$0x1]
    %55 = vrot.lane.b32.xlu0 %v54, 56
    %v56 = vpop.permute.xlu0 %55
    %vm57 = vcmask 523712
    %58 = vst.msk [vmem:[#allocation0] sm:$0x1] %vm57, %v56
    %s59 = scalar_lea.vmem %s0, 6
    %v60 = vld [vmem:[%s59] sm:$0x1]
    %61 = vrot.lane.b32.xlu0 %v60, 48
    %v62 = vpop.permute.xlu0 %61
    %vm63 = vcmask 458112
    %64 = vst.msk [vmem:[#allocation0] sm:$0x1] %vm63, %v62
    %s65 = scalar_lea.vmem %s0, 5
    %v66 = vld [vmem:[%s65] sm:$0x1]
    %67 = vrot.lane.b32.xlu0 %v66, 40
    %v68 = vpop.permute.xlu0 %67
    %vm69 = vcmask 392512
    %70 = vst.msk [vmem:[#allocation0] sm:$0x1] %vm69, %v68
    %s71 = scalar_lea.vmem %s0, 4
    %v72 = vld [vmem:[%s71] sm:$0x1]
    %73 = vrot.lane.b32.xlu0 %v72, 32
    %v74 = vpop.permute.xlu0 %73
    %vm75 = vcmask 326912
    %76 = vst.msk [vmem:[#allocation0] sm:$0x1] %vm75, %v74
    %s77 = scalar_lea.vmem %s0, 3
    %v78 = vld [vmem:[%s77] sm:$0x1]
    %79 = vrot.lane.b32.xlu0 %v78, 24
    %v80 = vpop.permute.xlu0 %79
    %vm81 = vcmask 261312
    %82 = vst.msk [vmem:[#allocation0] sm:$0x1] %vm81, %v80
    %s83 = scalar_lea.vmem %s0, 2
    %v84 = vld [vmem:[%s83] sm:$0x1]
    %85 = vrot.lane.b32.xlu0 %v84, 16
    %v86 = vpop.permute.xlu0 %85
    %vm87 = vcmask 195712
    %88 = vst.msk [vmem:[#allocation0] sm:$0x1] %vm87, %v86
    %s89 = scalar_lea.vmem %s0, 1
    %v90 = vld [vmem:[%s89] sm:$0x1]
    %91 = vrot.lane.b32.xlu0 %v90, 8
    %v92 = vpop.permute.xlu0 %91
    %vm93 = vcmask 130112
    %94 = vst.msk [vmem:[#allocation0] sm:$0x1] %vm93, %v92
    %s96 = sshllo.u32 0, 1
    %v98 = vld [vmem:[#allocation0] sm:%s96]
    %s99 = sshllo.u32 0, 1
    %100 = vst [vmem:[%s1] sm:%s99] %v98

// kernel: tile.33
$region0: #{tile.33}
  #allocation0 [shape = 's32[1]{0}', space=sflag, size = 0x4, scoped, tag = 'scoped memory for tile.33']
  %s0 = inlined_call_operand.vmem [shape: f32[8], index: 0, kind: input, shape index: {}]
  %s1 = inlined_call_operand.vmem [shape: f32[16,8], index: 1, kind: output, shape index: {}]
  // Predicated region
  $region2: #{tile.33} parent=0 // pred_check
    _
  $region3: #{tile.33} parent=0 // pred_check_branch
    %3 = sbr.rel (0) target = $region5
  $region4: #{tile.33} parent=0 // pred_region
    _
  $region5: #{tile.33} parent=0 // pred_fallthru
    _
  %v4 = vld [vmem:[%s0] ss:$0 sm:$0xff]
  %5 = vst [vmem:[%s1] sm:$0xff] %v4
  %s6 = scalar_lea.vmem %s1, 8
  %7 = vst [vmem:[%s6] sm:$0xff] %v4

// kernel: block_forward.1
$region0: #{block_forward.1}
  #allocation0 [shape = 'u32[]', space=smem, size = 0x4, offset = 0x4, fixed_abs, tag = 'smem constant byte address 0x4 - core index']
  #allocation1 [shape = 'u32[144,128]{1,0:T(1,128)}', space=vmem, size = 0x12000, scoped, tag = 'internal scratch']
  %s0 = inlined_call_operand.vmem [shape: f32[32,128], index: 0, kind: input, shape index: {}]
  %s1 = inlined_call_operand.vmem [shape: f32[32,32], index: 1, kind: input, shape index: {}]
  %s2 = inlined_call_operand.vmem [shape: f32[32,32], index: 2, kind: input, shape index: {}]
  %s3 = inlined_call_operand.vmem [shape: f32[128,128], index: 3, kind: input, shape index: {}]
  %s4 = inlined_call_operand.vmem [shape: f32[3,128,128], index: 4, kind: input, shape index: {}]
  %s5 = inlined_call_operand.vmem [shape: f32[1,128], index: 5, kind: input, shape index: {}]
  %s6 = inlined_call_operand.vmem [shape: f32[1,128], index: 6, kind: input, shape index: {}]
  %s7 = inlined_call_operand.vmem [shape: f32[1,128], index: 7, kind: input, shape index: {}]
  %s8 = inlined_call_operand.vmem [shape: f32[3,128,128], index: 8, kind: input, shape index: {}]
  %s9 = inlined_call_operand.vmem [shape: f32[1,128], index: 9, kind: input, shape index: {}]
  %s10 = inlined_call_operand.vmem [shape: f32[1,128], index: 10, kind: input, shape index: {}]
  %s11 = inlined_call_operand.vmem [shape: f32[1,128], index: 11, kind: input, shape index: {}]
  %s12 = inlined_call_operand.vmem [shape: f32[32,128], index: 12, kind: output, shape index: {}]
  %s13 = sld [smem:[#allocation0]]
  $region58: #{block_forward.1} parent=0
    _
  %s15 = ssub.s32 1, %s13
  %s16 = scalar_select 0, %s15, %s13
  // Predicated region
  $region2: #{block_forward.1} parent=0 // pred_check
    _
  $region3: #{block_forward.1} parent=0 // pred_check_branch
    %18 = sbr.rel (0) target = $region5
  $region4: #{block_forward.1} parent=0 // pred_region
    _
  $region5: #{block_forward.1} parent=0 // pred_fallthru
    _
  // Predicated region
  $region6: #{block_forward.1} parent=0 // pred_check
    _
  $region7: #{block_forward.1} parent=0 // pred_check_branch
    %20 = sbr.rel (0) target = $region9
  $region8: #{block_forward.1} parent=0 // pred_region
    _
  $region9: #{block_forward.1} parent=0 // pred_fallthru
    _
  // Predicated region
  $region10: #{block_forward.1} parent=0 // pred_check
    _
  $region11: #{block_forward.1} parent=0 // pred_check_branch
    %22 = sbr.rel (0) target = $region13
  $region12: #{block_forward.1} parent=0 // pred_region
    _
  $region13: #{block_forward.1} parent=0 // pred_fallthru
    _
  // Predicated region
  $region14: #{block_forward.1} parent=0 // pred_check
    _
  $region15: #{block_forward.1} parent=0 // pred_check_branch
    %24 = sbr.rel (0) target = $region17
  $region16: #{block_forward.1} parent=0 // pred_region
    _
  $region17: #{block_forward.1} parent=0 // pred_fallthru
    _
  // Predicated region
  $region18: #{block_forward.1} parent=0 // pred_check
    _
  $region19: #{block_forward.1} parent=0 // pred_check_branch
    %26 = sbr.rel (0) target = $region21
  $region20: #{block_forward.1} parent=0 // pred_region
    _
  $region21: #{block_forward.1} parent=0 // pred_fallthru
    _
  // Predicated region
  $region22: #{block_forward.1} parent=0 // pred_check
    _
  $region23: #{block_forward.1} parent=0 // pred_check_branch
    %28 = sbr.rel (0) target = $region25
  $region24: #{block_forward.1} parent=0 // pred_region
    _
  $region25: #{block_forward.1} parent=0 // pred_fallthru
    _
  // Predicated region
  $region26: #{block_forward.1} parent=0 // pred_check
    _
  $region27: #{block_forward.1} parent=0 // pred_check_branch
    %30 = sbr.rel (0) target = $region29
  $region28: #{block_forward.1} parent=0 // pred_region
    _
  $region29: #{block_forward.1} parent=0 // pred_fallthru
    _
  // Predicated region
  $region30: #{block_forward.1} parent=0 // pred_check
    _
  $region31: #{block_forward.1} parent=0 // pred_check_branch
    %32 = sbr.rel (0) target = $region33
  $region32: #{block_forward.1} parent=0 // pred_region
    _
  $region33: #{block_forward.1} parent=0 // pred_fallthru
    _
  // Predicated region
  $region34: #{block_forward.1} parent=0 // pred_check
    _
  $region35: #{block_forward.1} parent=0 // pred_check_branch
    %34 = sbr.rel (0) target = $region37
  $region36: #{block_forward.1} parent=0 // pred_region
    _
  $region37: #{block_forward.1} parent=0 // pred_fallthru
    _
  // Predicated region
  $region38: #{block_forward.1} parent=0 // pred_check
    _
  $region39: #{block_forward.1} parent=0 // pred_check_branch
    %36 = sbr.rel (0) target = $region41
  $region40: #{block_forward.1} parent=0 // pred_region
    _
  $region41: #{block_forward.1} parent=0 // pred_fallthru
    _
  // Predicated region
  $region42: #{block_forward.1} parent=0 // pred_check
    _
  $region43: #{block_forward.1} parent=0 // pred_check_branch
    %38 = sbr.rel (0) target = $region45
  $region44: #{block_forward.1} parent=0 // pred_region
    _
  $region45: #{block_forward.1} parent=0 // pred_fallthru
    _
  // Predicated region
  $region46: #{block_forward.1} parent=0 // pred_check
    _
  $region47: #{block_forward.1} parent=0 // pred_check_branch
    %40 = sbr.rel (0) target = $region49
  $region48: #{block_forward.1} parent=0 // pred_region
    _
  $region49: #{block_forward.1} parent=0 // pred_fallthru
    _
  %v41 = vld [vmem:[%s0] sm:$0xff]
  %v42 = vld [vmem:[%s0 + $0x8] sm:$0xff]
  %v43 = vld [vmem:[%s0 + $0x10] sm:$0xff]
  %v44 = vld [vmem:[%s0 + $0x18] sm:$0xff]
  %v45 = vld [vmem:[%s1] sm:$0xff]
  %v46 = vld [vmem:[%s1 + $0x8] sm:$0xff]
  %v47 = vld [vmem:[%s1 + $0x10] sm:$0xff]
  %v48 = vld [vmem:[%s1 + $0x18] sm:$0xff]
  %v49 = vld [vmem:[%s2] sm:$0xff]
  %v50 = vld [vmem:[%s2 + $0x8] sm:$0xff]
  %v51 = vld [vmem:[%s2 + $0x10] sm:$0xff]
  %v52 = vld [vmem:[%s2 + $0x18] sm:$0xff]
  %v53 = vld [vmem:[%s3] sm:$0xff]
  %v54 = vld [vmem:[%s3 + $0x8] sm:$0xff]
  %v55 = vld [vmem:[%s3 + $0x10] sm:$0xff]
  %v56 = vld [vmem:[%s3 + $0x18] sm:$0xff]
  %v57 = vld [vmem:[%s3 + $0x20] sm:$0xff]
  %v58 = vld [vmem:[%s3 + $0x28] sm:$0xff]
  %v59 = vld [vmem:[%s3 + $0x30] sm:$0xff]
  %v60 = vld [vmem:[%s3 + $0x38] sm:$0xff]
  %v61 = vld [vmem:[%s3 + $0x40] sm:$0xff]
  %v62 = vld [vmem:[%s3 + $0x48] sm:$0xff]
  %v63 = vld [vmem:[%s3 + $0x50] sm:$0xff]
  %v64 = vld [vmem:[%s3 + $0x58] sm:$0xff]
  %v65 = vld [vmem:[%s3 + $0x60] sm:$0xff]
  %v66 = vld [vmem:[%s3 + $0x68] sm:$0xff]
  %v67 = vld [vmem:[%s3 + $0x70] sm:$0xff]
  %v68 = vld [vmem:[%s3 + $0x78] sm:$0xff]
  %v69 = vld [vmem:[%s4] sm:$0xff]
  %v70 = vld [vmem:[%s4 + $0x8] sm:$0xff]
  %v71 = vld [vmem:[%s4 + $0x10] sm:$0xff]
  %v72 = vld [vmem:[%s4 + $0x18] sm:$0xff]
  %v73 = vld [vmem:[%s4 + $0x20] sm:$0xff]
  %v74 = vld [vmem:[%s4 + $0x28] sm:$0xff]
  %v75 = vld [vmem:[%s4 + $0x30] sm:$0xff]
  %v76 = vld [vmem:[%s4 + $0x38] sm:$0xff]
  %v77 = vld [vmem:[%s4 + $0x40] sm:$0xff]
  %v78 = vld [vmem:[%s4 + $0x48] sm:$0xff]
  %v79 = vld [vmem:[%s4 + $0x50] sm:$0xff]
  %v80 = vld [vmem:[%s4 + $0x58] sm:$0xff]
  %v81 = vld [vmem:[%s4 + $0x60] sm:$0xff]
  %v82 = vld [vmem:[%s4 + $0x68] sm:$0xff]
  %v83 = vld [vmem:[%s4 + $0x70] sm:$0xff]
  %v84 = vld [vmem:[%s4 + $0x78] sm:$0xff]
  %85 = vmatprep.subr.mxu0 0.0
  %86 = vmatpush1.msra.mxu0 %v69
  %87 = vmatprep.subr.mxu0 0.0
  %88 = vmatpush1.msra.mxu0 %v70
  %89 = vmatprep.subr.mxu0 0.0
  %90 = vmatpush1.msra.mxu0 %v71
  %91 = vmatprep.subr.mxu0 0.0
  %92 = vmatpush1.msra.mxu0 %v72
  %93 = vmatprep.subr.mxu0 0.0
  %94 = vmatpush1.msra.mxu0 %v73
  %95 = vmatprep.subr.mxu0 0.0
  %96 = vmatpush1.msra.mxu0 %v74
  %97 = vmatprep.subr.mxu0 0.0
  %98 = vmatpush1.msra.mxu0 %v75
  %99 = vmatprep.subr.mxu0 0.0
  %100 = vmatpush1.msra.mxu0 %v76
  %101 = vmatprep.subr.mxu0 0.0
  %102 = vmatpush1.msra.mxu0 %v77
  %103 = vmatprep.subr.mxu0 0.0
  %104 = vmatpush1.msra.mxu0 %v78
  %105 = vmatprep.subr.mxu0 0.0
  %106 = vmatpush1.msra.mxu0 %v79
  %107 = vmatprep.subr.mxu0 0.0
  %108 = vmatpush1.msra.mxu0 %v80
  %109 = vmatprep.subr.mxu0 0.0
  %110 = vmatpush1.msra.mxu0 %v81
  %111 = vmatprep.subr.mxu0 0.0
  %112 = vmatpush1.msra.mxu0 %v82
  %113 = vmatprep.subr.mxu0 0.0
  %114 = vmatpush1.msra.mxu0 %v83
  %115 = vmatprep.subr.mxu0 0.0
  %116 = vmatpush1.msra.mxu0 %v84
  %117 = vmatprep.subr.mxu0 0.0
  %118 = vmatpush1.msra.mxu0 0.0
  %119 = vmatprep.subr.mxu0 0.0
  %120 = vmatpush1.msra.mxu0 0.0
  %121 = vmatprep.subr.mxu0 0.0
  %122 = vmatpush1.msra.mxu0 0.0
  %123 = vmatprep.subr.mxu0 0.0
  %124 = vmatpush1.msra.mxu0 0.0
  %125 = vmatprep.subr.mxu0 0.0
  %126 = vmatpush1.msra.mxu0 0.0
  %127 = vmatprep.subr.mxu0 0.0
  %128 = vmatpush1.msra.mxu0 0.0
  %129 = vmatprep.subr.mxu0 0.0
  %130 = vmatpush1.msra.mxu0 0.0
  %131 = vmatprep.subr.mxu0 0.0
  %132 = vmatpush1.msra.mxu0 0.0
  %133 = vmatprep.subr.mxu0 0.0
  %134 = vmatpush1.msra.mxu0 0.0
  %135 = vmatprep.subr.mxu0 0.0
  %136 = vmatpush1.msra.mxu0 0.0
  %137 = vmatprep.subr.mxu0 0.0
  %138 = vmatpush1.msra.mxu0 0.0
  %139 = vmatprep.subr.mxu0 0.0
  %140 = vmatpush1.msra.mxu0 0.0
  %141 = vmatprep.subr.mxu0 0.0
  %142 = vmatpush1.msra.mxu0 0.0
  %143 = vmatprep.subr.mxu0 0.0
  %144 = vmatpush1.msra.mxu0 0.0
  %145 = vmatprep.subr.mxu0 0.0
  %146 = vmatpush1.msra.mxu0 0.0
  %147 = vmatprep.subr.mxu0 0.0
  %148 = vmatpush1.msra.mxu0 0.0
  %149 = vmatprep.mubr.f32.mxu0 0.0
  %150 = vmatmul.mubr.f32.gmra.mrb[0].mxu0 %v41
  %v151 = vpop.f32.mrb[0].mxu0
  %v152 = vadd.f32 0.0, %v151
  %v153 = vpop.f32.mrb[0].mxu0
  %154 = vmatprep.mubr.f32.mxu0 0.0
  %155 = vmatmul.mubr.f32.gmra.mrb[0].mxu0 %v42
  %v156 = vpop.f32.mrb[0].mxu0
  %v157 = vadd.f32 0.0, %v156
  %v158 = vpop.f32.mrb[0].mxu0
  %159 = vmatprep.mubr.f32.mxu0 0.0
  %160 = vmatmul.mubr.f32.gmra.mrb[0].mxu0 %v43
  %v161 = vpop.f32.mrb[0].mxu0
  %v162 = vadd.f32 0.0, %v161
  %v163 = vpop.f32.mrb[0].mxu0
  %164 = vmatprep.mubr.f32.mxu0 0.0
  %165 = vmatmul.mubr.f32.gmra.mrb[0].mxu0 %v44
  %v166 = vpop.f32.mrb[0].mxu0
  %v167 = vadd.f32 0.0, %v166
  %v168 = vpop.f32.mrb[0].mxu0
  %169 = vdwg.mxu0
  %s170 = scalar_lea.vmem %s4, 128
  %v171 = vld [vmem:[%s170] sm:$0xff]
  %v172 = vld [vmem:[%s170 + $0x8] sm:$0xff]
  %v173 = vld [vmem:[%s170 + $0x10] sm:$0xff]
  %v174 = vld [vmem:[%s170 + $0x18] sm:$0xff]
  %v175 = vld [vmem:[%s170 + $0x20] sm:$0xff]
  %v176 = vld [vmem:[%s170 + $0x28] sm:$0xff]
  %v177 = vld [vmem:[%s170 + $0x30] sm:$0xff]
  %v178 = vld [vmem:[%s170 + $0x38] sm:$0xff]
  %v179 = vld [vmem:[%s170 + $0x40] sm:$0xff]
  %v180 = vld [vmem:[%s170 + $0x48] sm:$0xff]
  %v181 = vld [vmem:[%s170 + $0x50] sm:$0xff]
  %v182 = vld [vmem:[%s170 + $0x58] sm:$0xff]
  %v183 = vld [vmem:[%s170 + $0x60] sm:$0xff]
  %v184 = vld [vmem:[%s170 + $0x68] sm:$0xff]
  %v185 = vld [vmem:[%s170 + $0x70] sm:$0xff]
  %v186 = vld [vmem:[%s170 + $0x78] sm:$0xff]
  %s187 = scalar_lea.vmem %s4, 256
  %v188 = vld [vmem:[%s187] sm:$0xff]
  %v189 = vld [vmem:[%s187 + $0x8] sm:$0xff]
  %v190 = vld [vmem:[%s187 + $0x10] sm:$0xff]
  %v191 = vld [vmem:[%s187 + $0x18] sm:$0xff]
  %v192 = vld [vmem:[%s187 + $0x20] sm:$0xff]
  %v193 = vld [vmem:[%s187 + $0x28] sm:$0xff]
  %v194 = vld [vmem:[%s187 + $0x30] sm:$0xff]
  %v195 = vld [vmem:[%s187 + $0x38] sm:$0xff]
  %v196 = vld [vmem:[%s187 + $0x40] sm:$0xff]
  %v197 = vld [vmem:[%s187 + $0x48] sm:$0xff]
  %v198 = vld [vmem:[%s187 + $0x50] sm:$0xff]
  %v199 = vld [vmem:[%s187 + $0x58] sm:$0xff]
  %v200 = vld [vmem:[%s187 + $0x60] sm:$0xff]
  %v201 = vld [vmem:[%s187 + $0x68] sm:$0xff]
  %v202 = vld [vmem:[%s187 + $0x70] sm:$0xff]
  %v203 = vld [vmem:[%s187 + $0x78] sm:$0xff]
  %204 = vmatprep.subr.mxu0 0.0
  %205 = vmatpush1.msra.mxu0 %v188
  %206 = vmatprep.subr.mxu0 0.0
  %207 = vmatpush1.msra.mxu0 %v189
  %208 = vmatprep.subr.mxu0 0.0
  %209 = vmatpush1.msra.mxu0 %v190
  %210 = vmatprep.subr.mxu0 0.0
  %211 = vmatpush1.msra.mxu0 %v191
  %212 = vmatprep.subr.mxu0 0.0
  %213 = vmatpush1.msra.mxu0 %v192
  %214 = vmatprep.subr.mxu0 0.0
  %215 = vmatpush1.msra.mxu0 %v193
  %216 = vmatprep.subr.mxu0 0.0
  %217 = vmatpush1.msra.mxu0 %v194
  %218 = vmatprep.subr.mxu0 0.0
  %219 = vmatpush1.msra.mxu0 %v195
  %220 = vmatprep.subr.mxu0 0.0
  %221 = vmatpush1.msra.mxu0 %v196
  %222 = vmatprep.subr.mxu0 0.0
  %223 = vmatpush1.msra.mxu0 %v197
  %224 = vmatprep.subr.mxu0 0.0
  %225 = vmatpush1.msra.mxu0 %v198
  %226 = vmatprep.subr.mxu0 0.0
  %227 = vmatpush1.msra.mxu0 %v199
  %228 = vmatprep.subr.mxu0 0.0
  %229 = vmatpush1.msra.mxu0 %v200
  %230 = vmatprep.subr.mxu0 0.0
  %231 = vmatpush1.msra.mxu0 %v201
  %232 = vmatprep.subr.mxu0 0.0
  %233 = vmatpush1.msra.mxu0 %v202
  %234 = vmatprep.subr.mxu0 0.0
  %235 = vmatpush1.msra.mxu0 %v203
  %236 = vmatprep.subr.mxu0 0.0
  %237 = vmatpush1.msra.mxu0 0.0
  %238 = vmatprep.subr.mxu0 0.0
  %239 = vmatpush1.msra.mxu0 0.0
  %240 = vmatprep.subr.mxu0 0.0
  %241 = vmatpush1.msra.mxu0 0.0
  %242 = vmatprep.subr.mxu0 0.0
  %243 = vmatpush1.msra.mxu0 0.0
  %244 = vmatprep.subr.mxu0 0.0
  %245 = vmatpush1.msra.mxu0 0.0
  %246 = vmatprep.subr.mxu0 0.0
  %247 = vmatpush1.msra.mxu0 0.0
  %248 = vmatprep.subr.mxu0 0.0
  %249 = vmatpush1.msra.mxu0 0.0
  %250 = vmatprep.subr.mxu0 0.0
  %251 = vmatpush1.msra.mxu0 0.0
  %252 = vmatprep.subr.mxu0 0.0
  %253 = vmatpush1.msra.mxu0 0.0
  %254 = vmatprep.subr.mxu0 0.0
  %255 = vmatpush1.msra.mxu0 0.0
  %256 = vmatprep.subr.mxu0 0.0
  %257 = vmatpush1.msra.mxu0 0.0
  %258 = vmatprep.subr.mxu0 0.0
  %259 = vmatpush1.msra.mxu0 0.0
  %260 = vmatprep.subr.mxu0 0.0
  %261 = vmatpush1.msra.mxu0 0.0
  %262 = vmatprep.subr.mxu0 0.0
  %263 = vmatpush1.msra.mxu0 0.0
  %264 = vmatprep.subr.mxu0 0.0
  %265 = vmatpush1.msra.mxu0 0.0
  %266 = vmatprep.subr.mxu0 0.0
  %267 = vmatpush1.msra.mxu0 0.0
  %268 = vmatprep.mubr.f32.mxu0 0.0
  %269 = vmatmul.mubr.f32.gmra.mrb[0].mxu0 %v41
  %v270 = vpop.f32.mrb[0].mxu0
  %v271 = vadd.f32 0.0, %v270
  %v272 = vpop.f32.mrb[0].mxu0
  %273 = vmatprep.mubr.f32.mxu0 0.0
  %274 = vmatmul.mubr.f32.gmra.mrb[0].mxu0 %v42
  %v275 = vpop.f32.mrb[0].mxu0
  %v276 = vadd.f32 0.0, %v275
  %v277 = vpop.f32.mrb[0].mxu0
  %278 = vmatprep.mubr.f32.mxu0 0.0
  %279 = vmatmul.mubr.f32.gmra.mrb[0].mxu0 %v43
  %v280 = vpop.f32.mrb[0].mxu0
  %v281 = vadd.f32 0.0, %v280
  %v282 = vpop.f32.mrb[0].mxu0
  %283 = vmatprep.mubr.f32.mxu0 0.0
  %284 = vmatmul.mubr.f32.gmra.mrb[0].mxu0 %v44
  %v285 = vpop.f32.mrb[0].mxu0
  %v286 = vadd.f32 0.0, %v285
  %v287 = vpop.f32.mrb[0].mxu0
  %288 = vdwg.mxu0
  %vm289 = vcmask 261120
  %v291 = vsel %vm289, %v45, 0
  %v294 = vsel %vm289, %v46, 0
  %v297 = vsel %vm289, %v47, 0
  %v300 = vsel %vm289, %v48, 0
  %302 = vmatprep.subr.mxu0 0.0
  %303 = vmatpush1.msra.mxu0 %v152
  %304 = vmatprep.subr.mxu0 0.0
  %305 = vmatpush1.msra.mxu0 %v157
  %306 = vmatprep.subr.mxu0 0.0
  %307 = vmatpush1.msra.mxu0 %v162
  %308 = vmatprep.subr.mxu0 0.0
  %309 = vmatpush1.msra.mxu0 %v167
  %310 = vmatprep.subr.mxu0 0.0
  %311 = vmatpush1.msra.mxu0 0.0
  %312 = vmatprep.subr.mxu0 0.0
  %313 = vmatpush1.msra.mxu0 0.0
  %314 = vmatprep.subr.mxu0 0.0
  %315 = vmatpush1.msra.mxu0 0.0
  %316 = vmatprep.subr.mxu0 0.0
  %317 = vmatpush1.msra.mxu0 0.0
  %318 = vmatprep.subr.mxu0 0.0
  %319 = vmatpush1.msra.mxu0 0.0
  %320 = vmatprep.subr.mxu0 0.0
  %321 = vmatpush1.msra.mxu0 0.0
  %322 = vmatprep.subr.mxu0 0.0
  %323 = vmatpush1.msra.mxu0 0.0
  %324 = vmatprep.subr.mxu0 0.0
  %325 = vmatpush1.msra.mxu0 0.0
  %326 = vmatprep.subr.mxu0 0.0
  %327 = vmatpush1.msra.mxu0 0.0
  %328 = vmatprep.subr.mxu0 0.0
  %329 = vmatpush1.msra.mxu0 0.0
  %330 = vmatprep.subr.mxu0 0.0
  %331 = vmatpush1.msra.mxu0 0.0
  %332 = vmatprep.subr.mxu0 0.0
  %333 = vmatpush1.msra.mxu0 0.0
  %334 = vmatprep.subr.mxu0 0.0
  %335 = vmatpush1.msra.mxu0 0.0
  %336 = vmatprep.subr.mxu0 0.0
  %337 = vmatpush1.msra.mxu0 0.0
  %338 = vmatprep.subr.mxu0 0.0
  %339 = vmatpush1.msra.mxu0 0.0
  %340 = vmatprep.subr.mxu0 0.0
  %341 = vmatpush1.msra.mxu0 0.0
  %342 = vmatprep.subr.mxu0 0.0
  %343 = vmatpush1.msra.mxu0 0.0
  %344 = vmatprep.subr.mxu0 0.0
  %345 = vmatpush1.msra.mxu0 0.0
  %346 = vmatprep.subr.mxu0 0.0
  %347 = vmatpush1.msra.mxu0 0.0
  %348 = vmatprep.subr.mxu0 0.0
  %349 = vmatpush1.msra.mxu0 0.0
  %350 = vmatprep.subr.mxu0 0.0
  %351 = vmatpush1.msra.mxu0 0.0
  %352 = vmatprep.subr.mxu0 0.0
  %353 = vmatpush1.msra.mxu0 0.0
  %354 = vmatprep.subr.mxu0 0.0
  %355 = vmatpush1.msra.mxu0 0.0
  %356 = vmatprep.subr.mxu0 0.0
  %357 = vmatpush1.msra.mxu0 0.0
  %358 = vmatprep.subr.mxu0 0.0
  %359 = vmatpush1.msra.mxu0 0.0
  %360 = vmatprep.subr.mxu0 0.0
  %361 = vmatpush1.msra.mxu0 0.0
  %362 = vmatprep.subr.mxu0 0.0
  %363 = vmatpush1.msra.mxu0 0.0
  %364 = vmatprep.subr.mxu0 0.0
  %365 = vmatpush1.msra.mxu0 0.0
  %366 = vmatprep.mubr.f32.mxu0 0.0
  %367 = vmatmul.mubr.f32.gmra.mrb[0].mxu0 %v291
  %v368 = vpop.f32.mrb[0].mxu0
  %v369 = vadd.f32 0.0, %v368
  %v370 = vpop.f32.mrb[0].mxu0
  %371 = vmatprep.mubr.f32.mxu0 0.0
  %372 = vmatmul.mubr.f32.gmra.mrb[0].mxu0 %v294
  %v373 = vpop.f32.mrb[0].mxu0
  %v374 = vadd.f32 0.0, %v373
  %v375 = vpop.f32.mrb[0].mxu0
  %376 = vmatprep.mubr.f32.mxu0 0.0
  %377 = vmatmul.mubr.f32.gmra.mrb[0].mxu0 %v297
  %v378 = vpop.f32.mrb[0].mxu0
  %v379 = vadd.f32 0.0, %v378
  %v380 = vpop.f32.mrb[0].mxu0
  %381 = vmatprep.mubr.f32.mxu0 0.0
  %382 = vmatmul.mubr.f32.gmra.mrb[0].mxu0 %v300
  %v383 = vpop.f32.mrb[0].mxu0
  %v384 = vadd.f32 0.0, %v383
  %v385 = vpop.f32.mrb[0].mxu0
  %386 = vdwg.mxu0
  %387 = vmatprep.subr.mxu0 0.0
  %388 = vmatpush1.msra.mxu0 %v171
  %389 = vmatprep.subr.mxu0 0.0
  %390 = vmatpush1.msra.mxu0 %v172
  %391 = vmatprep.subr.mxu0 0.0
  %392 = vmatpush1.msra.mxu0 %v173
  %393 = vmatprep.subr.mxu0 0.0
  %394 = vmatpush1.msra.mxu0 %v174
  %395 = vmatprep.subr.mxu0 0.0
  %396 = vmatpush1.msra.mxu0 %v175
  %397 = vmatprep.subr.mxu0 0.0
  %398 = vmatpush1.msra.mxu0 %v176
  %399 = vmatprep.subr.mxu0 0.0
  %400 = vmatpush1.msra.mxu0 %v177
  %401 = vmatprep.subr.mxu0 0.0
  %402 = vmatpush1.msra.mxu0 %v178
  %403 = vmatprep.subr.mxu0 0.0
  %404 = vmatpush1.msra.mxu0 %v179
  %405 = vmatprep.subr.mxu0 0.0
  %406 = vmatpush1.msra.mxu0 %v180
  %407 = vmatprep.subr.mxu0 0.0
  %408 = vmatpush1.msra.mxu0 %v181
  %409 = vmatprep.subr.mxu0 0.0
  %410 = vmatpush1.msra.mxu0 %v182
  %411 = vmatprep.subr.mxu0 0.0
  %412 = vmatpush1.msra.mxu0 %v183
  %413 = vmatprep.subr.mxu0 0.0
  %414 = vmatpush1.msra.mxu0 %v184
  %415 = vmatprep.subr.mxu0 0.0
  %416 = vmatpush1.msra.mxu0 %v185
  %417 = vmatprep.subr.mxu0 0.0
  %418 = vmatpush1.msra.mxu0 %v186
  %419 = vmatprep.subr.mxu0 0.0
  %420 = vmatpush1.msra.mxu0 0.0
  %421 = vmatprep.subr.mxu0 0.0
  %422 = vmatpush1.msra.mxu0 0.0
  %423 = vmatprep.subr.mxu0 0.0
  %424 = vmatpush1.msra.mxu0 0.0
  %425 = vmatprep.subr.mxu0 0.0
  %426 = vmatpush1.msra.mxu0 0.0
  %427 = vmatprep.subr.mxu0 0.0
  %428 = vmatpush1.msra.mxu0 0.0
  %429 = vmatprep.subr.mxu0 0.0
  %430 = vmatpush1.msra.mxu0 0.0
  %431 = vmatprep.subr.mxu0 0.0
  %432 = vmatpush1.msra.mxu0 0.0
  %433 = vmatprep.subr.mxu0 0.0
  %434 = vmatpush1.msra.mxu0 0.0
  %435 = vmatprep.subr.mxu0 0.0
  %436 = vmatpush1.msra.mxu0 0.0
  %437 = vmatprep.subr.mxu0 0.0
  %438 = vmatpush1.msra.mxu0 0.0
  %439 = vmatprep.subr.mxu0 0.0
  %440 = vmatpush1.msra.mxu0 0.0
  %441 = vmatprep.subr.mxu0 0.0
  %442 = vmatpush1.msra.mxu0 0.0
  %443 = vmatprep.subr.mxu0 0.0
  %444 = vmatpush1.msra.mxu0 0.0
  %445 = vmatprep.subr.mxu0 0.0
  %446 = vmatpush1.msra.mxu0 0.0
  %447 = vmatprep.subr.mxu0 0.0
  %448 = vmatpush1.msra.mxu0 0.0
  %449 = vmatprep.subr.mxu0 0.0
  %450 = vmatpush1.msra.mxu0 0.0
  %451 = vmatprep.mubr.f32.mxu0 0.0
  %452 = vmatmul.mubr.f32.gmra.mrb[0].mxu0 %v41
  %v453 = vpop.f32.mrb[0].mxu0
  %v454 = vadd.f32 %v369, %v453
  %v455 = vpop.f32.mrb[0].mxu0
  %456 = vmatprep.mubr.f32.mxu0 0.0
  %457 = vmatmul.mubr.f32.gmra.mrb[0].mxu0 %v42
  %v458 = vpop.f32.mrb[0].mxu0
  %v459 = vadd.f32 %v374, %v458
  %v460 = vpop.f32.mrb[0].mxu0
  %461 = vmatprep.mubr.f32.mxu0 0.0
  %462 = vmatmul.mubr.f32.gmra.mrb[0].mxu0 %v43
  %v463 = vpop.f32.mrb[0].mxu0
  %v464 = vadd.f32 %v379, %v463
  %v465 = vpop.f32.mrb[0].mxu0
  %466 = vmatprep.mubr.f32.mxu0 0.0
  %467 = vmatmul.mubr.f32.gmra.mrb[0].mxu0 %v44
  %v468 = vpop.f32.mrb[0].mxu0
  %v469 = vadd.f32 %v384, %v468
  %v470 = vpop.f32.mrb[0].mxu0
  %471 = vdwg.mxu0
  %v473 = vsel %vm289, %v49, 0
  %v476 = vsel %vm289, %v50, 0
  %v479 = vsel %vm289, %v51, 0
  %v482 = vsel %vm289, %v52, 0
  %484 = vmatprep.subr.mxu0 0.0
  %485 = vmatpush1.msra.mxu0 %v271
  %486 = vmatprep.subr.mxu0 0.0
  %487 = vmatpush1.msra.mxu0 %v276
  %488 = vmatprep.subr.mxu0 0.0
  %489 = vmatpush1.msra.mxu0 %v281
  %490 = vmatprep.subr.mxu0 0.0
  %491 = vmatpush1.msra.mxu0 %v286
  %492 = vmatprep.subr.mxu0 0.0
  %493 = vmatpush1.msra.mxu0 0.0
  %494 = vmatprep.subr.mxu0 0.0
  %495 = vmatpush1.msra.mxu0 0.0
  %496 = vmatprep.subr.mxu0 0.0
  %497 = vmatpush1.msra.mxu0 0.0
  %498 = vmatprep.subr.mxu0 0.0
  %499 = vmatpush1.msra.mxu0 0.0
  %500 = vmatprep.subr.mxu0 0.0
  %501 = vmatpush1.msra.mxu0 0.0
  %502 = vmatprep.subr.mxu0 0.0
  %503 = vmatpush1.msra.mxu0 0.0
  %504 = vmatprep.subr.mxu0 0.0
  %505 = vmatpush1.msra.mxu0 0.0
  %506 = vmatprep.subr.mxu0 0.0
  %507 = vmatpush1.msra.mxu0 0.0
  %508 = vmatprep.subr.mxu0 0.0
  %509 = vmatpush1.msra.mxu0 0.0
  %510 = vmatprep.subr.mxu0 0.0
  %511 = vmatpush1.msra.mxu0 0.0
  %512 = vmatprep.subr.mxu0 0.0
  %513 = vmatpush1.msra.mxu0 0.0
  %514 = vmatprep.subr.mxu0 0.0
  %515 = vmatpush1.msra.mxu0 0.0
  %516 = vmatprep.subr.mxu0 0.0
  %517 = vmatpush1.msra.mxu0 0.0
  %518 = vmatprep.subr.mxu0 0.0
  %519 = vmatpush1.msra.mxu0 0.0
  %520 = vmatprep.subr.mxu0 0.0
  %521 = vmatpush1.msra.mxu0 0.0
  %522 = vmatprep.subr.mxu0 0.0
  %523 = vmatpush1.msra.mxu0 0.0
  %524 = vmatprep.subr.mxu0 0.0
  %525 = vmatpush1.msra.mxu0 0.0
  %526 = vmatprep.subr.mxu0 0.0
  %527 = vmatpush1.msra.mxu0 0.0
  %528 = vmatprep.subr.mxu0 0.0
  %529 = vmatpush1.msra.mxu0 0.0
  %530 = vmatprep.subr.mxu0 0.0
  %531 = vmatpush1.msra.mxu0 0.0
  %532 = vmatprep.subr.mxu0 0.0
  %533 = vmatpush1.msra.mxu0 0.0
  %534 = vmatprep.subr.mxu0 0.0
  %535 = vmatpush1.msra.mxu0 0.0
  %536 = vmatprep.subr.mxu0 0.0
  %537 = vmatpush1.msra.mxu0 0.0
  %538 = vmatprep.subr.mxu0 0.0
  %539 = vmatpush1.msra.mxu0 0.0
  %540 = vmatprep.subr.mxu0 0.0
  %541 = vmatpush1.msra.mxu0 0.0
  %542 = vmatprep.subr.mxu0 0.0
  %543 = vmatpush1.msra.mxu0 0.0
  %544 = vmatprep.subr.mxu0 0.0
  %545 = vmatpush1.msra.mxu0 0.0
  %546 = vmatprep.subr.mxu0 0.0
  %547 = vmatpush1.msra.mxu0 0.0
  %548 = vmatprep.mubr.f32.mxu0 0.0
  %549 = vmatmul.mubr.f32.gmra.mrb[0].mxu0 %v473
  %v550 = vpop.f32.mrb[0].mxu0
  %v551 = vadd.f32 0.0, %v550
  %v552 = vpop.f32.mrb[0].mxu0
  %553 = vmatprep.mubr.f32.mxu0 0.0
  %554 = vmatmul.mubr.f32.gmra.mrb[0].mxu0 %v476
  %v555 = vpop.f32.mrb[0].mxu0
  %v556 = vadd.f32 0.0, %v555
  %v557 = vpop.f32.mrb[0].mxu0
  %558 = vmatprep.mubr.f32.mxu0 0.0
  %559 = vmatmul.mubr.f32.gmra.mrb[0].mxu0 %v479
  %v560 = vpop.f32.mrb[0].mxu0
  %v561 = vadd.f32 0.0, %v560
  %v562 = vpop.f32.mrb[0].mxu0
  %563 = vmatprep.mubr.f32.mxu0 0.0
  %564 = vmatmul.mubr.f32.gmra.mrb[0].mxu0 %v482
  %v565 = vpop.f32.mrb[0].mxu0
  %v566 = vadd.f32 0.0, %v565
  %v567 = vpop.f32.mrb[0].mxu0
  %568 = vdwg.mxu0
  %v569 = vadd.f32 %v454, %v551
  %v570 = vadd.f32 %v459, %v556
  %v571 = vadd.f32 %v464, %v561
  %v572 = vadd.f32 %v469, %v566
  %v573 = vld [vmem:[%s5] sm:$0x1]
  %v575 = vlaneseq
  %v576 = vshrl.u32 %v575, 7
  %v577 = vsub.s32 0, %v576
  %v578 = vrot.slane %v573, %v577
  %v580 = vadd.f32 %v569, %v578
  %v581 = vadd.f32 %v570, %v578
  %v582 = vadd.f32 %v571, %v578
  %v583 = vadd.f32 %v572, %v578
  %v584 = vadd.f32 %v580, %v581
  %v585 = vadd.f32 %v584, %v582
  %v586 = vadd.f32 %v585, %v583
  %v587 = vrot.slane %v586, 4
  %v588 = vadd.f32 %v586, %v587
  %v589 = vrot.slane %v588, 2
  %v590 = vadd.f32 %v588, %v589
  %v591 = vrot.slane %v590, 1
  %v592 = vadd.f32 %v590, %v591
  %v593 = vmul.f32 %v580, %v580
  %v594 = vmul.f32 %v581, %v581
  %v595 = vmul.f32 %v582, %v582
  %v596 = vmul.f32 %v583, %v583
  %v597 = vadd.f32 %v593, %v594
  %v598 = vadd.f32 %v597, %v595
  %v599 = vadd.f32 %v598, %v596
  %v600 = vrot.slane %v599, 4
  %v601 = vadd.f32 %v599, %v600
  %v602 = vrot.slane %v601, 2
  %v603 = vadd.f32 %v601, %v602
  %v604 = vrot.slane %v603, 1
  %v605 = vadd.f32 %v603, %v604
  %606 = vmatprep.subr.mxu0 0.0
  %607 = vmatpush1.msra.mxu0 %v53
  %608 = vmatprep.subr.mxu0 0.0
  %609 = vmatpush1.msra.mxu0 %v54
  %610 = vmatprep.subr.mxu0 0.0
  %611 = vmatpush1.msra.mxu0 %v55
  %612 = vmatprep.subr.mxu0 0.0
  %613 = vmatpush1.msra.mxu0 %v56
  %614 = vmatprep.subr.mxu0 0.0
  %615 = vmatpush1.msra.mxu0 %v57
  %616 = vmatprep.subr.mxu0 0.0
  %617 = vmatpush1.msra.mxu0 %v58
  %618 = vmatprep.subr.mxu0 0.0
  %619 = vmatpush1.msra.mxu0 %v59
  %620 = vmatprep.subr.mxu0 0.0
  %621 = vmatpush1.msra.mxu0 %v60
  %622 = vmatprep.subr.mxu0 0.0
  %623 = vmatpush1.msra.mxu0 %v61
  %624 = vmatprep.subr.mxu0 0.0
  %625 = vmatpush1.msra.mxu0 %v62
  %626 = vmatprep.subr.mxu0 0.0
  %627 = vmatpush1.msra.mxu0 %v63
  %628 = vmatprep.subr.mxu0 0.0
  %629 = vmatpush1.msra.mxu0 %v64
  %630 = vmatprep.subr.mxu0 0.0
  %631 = vmatpush1.msra.mxu0 %v65
  %632 = vmatprep.subr.mxu0 0.0
  %633 = vmatpush1.msra.mxu0 %v66
  %634 = vmatprep.subr.mxu0 0.0
  %635 = vmatpush1.msra.mxu0 %v67
  %636 = vmatprep.subr.mxu0 0.0
  %637 = vmatpush1.msra.mxu0 %v68
  %638 = vmatprep.subr.mxu0 0.0
  %639 = vmatpush1.msra.mxu0 0.0
  %640 = vmatprep.subr.mxu0 0.0
  %641 = vmatpush1.msra.mxu0 0.0
  %642 = vmatprep.subr.mxu0 0.0
  %643 = vmatpush1.msra.mxu0 0.0
  %644 = vmatprep.subr.mxu0 0.0
  %645 = vmatpush1.msra.mxu0 0.0
  %646 = vmatprep.subr.mxu0 0.0
  %647 = vmatpush1.msra.mxu0 0.0
  %648 = vmatprep.subr.mxu0 0.0
  %649 = vmatpush1.msra.mxu0 0.0
  %650 = vmatprep.subr.mxu0 0.0
  %651 = vmatpush1.msra.mxu0 0.0
  %652 = vmatprep.subr.mxu0 0.0
  %653 = vmatpush1.msra.mxu0 0.0
  %654 = vmatprep.subr.mxu0 0.0
  %655 = vmatpush1.msra.mxu0 0.0
  %656 = vmatprep.subr.mxu0 0.0
  %657 = vmatpush1.msra.mxu0 0.0
  %658 = vmatprep.subr.mxu0 0.0
  %659 = vmatpush1.msra.mxu0 0.0
  %660 = vmatprep.subr.mxu0 0.0
  %661 = vmatpush1.msra.mxu0 0.0
  %662 = vmatprep.subr.mxu0 0.0
  %663 = vmatpush1.msra.mxu0 0.0
  %664 = vmatprep.subr.mxu0 0.0
  %665 = vmatpush1.msra.mxu0 0.0
  %666 = vmatprep.subr.mxu0 0.0
  %667 = vmatpush1.msra.mxu0 0.0
  %668 = vmatprep.subr.mxu0 0.0
  %669 = vmatpush1.msra.mxu0 0.0
  %670 = vmatprep.mubr.f32.mxu0 0.0
  %671 = vmatmul.mubr.f32.gmra.mrb[0].mxu0 %v592
  %v672 = vpop.f32.mrb[0].mxu0
  %v673 = vadd.f32 0.0, %v672
  %v674 = vpop.f32.mrb[0].mxu0
  %675 = vdwg.mxu0
  %v676 = vmul.f32 %v673, 0.001953125
  %677 = vmatprep.subr.mxu0 0.0
  %678 = vmatpush1.msra.mxu0 %v53
  %679 = vmatprep.subr.mxu0 0.0
  %680 = vmatpush1.msra.mxu0 %v54
  %681 = vmatprep.subr.mxu0 0.0
  %682 = vmatpush1.msra.mxu0 %v55
  %683 = vmatprep.subr.mxu0 0.0
  %684 = vmatpush1.msra.mxu0 %v56
  %685 = vmatprep.subr.mxu0 0.0
  %686 = vmatpush1.msra.mxu0 %v57
  %687 = vmatprep.subr.mxu0 0.0
  %688 = vmatpush1.msra.mxu0 %v58
  %689 = vmatprep.subr.mxu0 0.0
  %690 = vmatpush1.msra.mxu0 %v59
  %691 = vmatprep.subr.mxu0 0.0
  %692 = vmatpush1.msra.mxu0 %v60
  %693 = vmatprep.subr.mxu0 0.0
  %694 = vmatpush1.msra.mxu0 %v61
  %695 = vmatprep.subr.mxu0 0.0
  %696 = vmatpush1.msra.mxu0 %v62
  %697 = vmatprep.subr.mxu0 0.0
  %698 = vmatpush1.msra.mxu0 %v63
  %699 = vmatprep.subr.mxu0 0.0
  %700 = vmatpush1.msra.mxu0 %v64
  %701 = vmatprep.subr.mxu0 0.0
  %702 = vmatpush1.msra.mxu0 %v65
  %703 = vmatprep.subr.mxu0 0.0
  %704 = vmatpush1.msra.mxu0 %v66
  %705 = vmatprep.subr.mxu0 0.0
  %706 = vmatpush1.msra.mxu0 %v67
  %707 = vmatprep.subr.mxu0 0.0
  %708 = vmatpush1.msra.mxu0 %v68
  %709 = vmatprep.subr.mxu0 0.0
  %710 = vmatpush1.msra.mxu0 0.0
  %711 = vmatprep.subr.mxu0 0.0
  %712 = vmatpush1.msra.mxu0 0.0
  %713 = vmatprep.subr.mxu0 0.0
  %714 = vmatpush1.msra.mxu0 0.0
  %715 = vmatprep.subr.mxu0 0.0
  %716 = vmatpush1.msra.mxu0 0.0
  %717 = vmatprep.subr.mxu0 0.0
  %718 = vmatpush1.msra.mxu0 0.0
  %719 = vmatprep.subr.mxu0 0.0
  %720 = vmatpush1.msra.mxu0 0.0
  %721 = vmatprep.subr.mxu0 0.0
  %722 = vmatpush1.msra.mxu0 0.0
  %723 = vmatprep.subr.mxu0 0.0
  %724 = vmatpush1.msra.mxu0 0.0
  %725 = vmatprep.subr.mxu0 0.0
  %726 = vmatpush1.msra.mxu0 0.0
  %727 = vmatprep.subr.mxu0 0.0
  %728 = vmatpush1.msra.mxu0 0.0
  %729 = vmatprep.subr.mxu0 0.0
  %730 = vmatpush1.msra.mxu0 0.0
  %731 = vmatprep.subr.mxu0 0.0
  %732 = vmatpush1.msra.mxu0 0.0
  %733 = vmatprep.subr.mxu0 0.0
  %734 = vmatpush1.msra.mxu0 0.0
  %735 = vmatprep.subr.mxu0 0.0
  %736 = vmatpush1.msra.mxu0 0.0
  %737 = vmatprep.subr.mxu0 0.0
  %738 = vmatpush1.msra.mxu0 0.0
  %739 = vmatprep.subr.mxu0 0.0
  %740 = vmatpush1.msra.mxu0 0.0
  %741 = vmatprep.mubr.f32.mxu0 0.0
  %742 = vmatmul.mubr.f32.gmra.mrb[0].mxu0 %v605
  %v743 = vpop.f32.mrb[0].mxu0
  %v744 = vadd.f32 0.0, %v743
  %v745 = vpop.f32.mrb[0].mxu0
  %746 = vdwg.mxu0
  %v747 = vmul.f32 %v744, 0.001953125
  %v748 = vmul.f32 %v676, %v676
  %v749 = vsub.f32 %v747, %v748
  %v750 = vadd.f32 %v749, 1e-05
  %v751 = vrsqrt.pop %v750
  %v752 = vld [vmem:[%s6] sm:$0x1]
  %v753 = vmul.f32 %v752, %v751
  %v754 = vld [vmem:[%s7] sm:$0x1]
  %v755 = vmul.f32 %v676, %v753
  %v756 = vsub.f32 %v754, %v755
  %v758 = vlaneseq
  %v759 = vshrl.u32 %v758, 7
  %v760 = vsub.s32 0, %v759
  %v761 = vrot.slane %v753, %v760
  %v763 = vmul.f32 %v580, %v761
  %v764 = vmul.f32 %v581, %v761
  %v765 = vmul.f32 %v582, %v761
  %v766 = vmul.f32 %v583, %v761
  %v768 = vlaneseq
  %v769 = vshrl.u32 %v768, 7
  %v770 = vsub.s32 0, %v769
  %v771 = vrot.slane %v756, %v770
  %v773 = vadd.f32 %v763, %v771
  %v774 = vadd.f32 %v764, %v771
  %v775 = vadd.f32 %v765, %v771
  %v776 = vadd.f32 %v766, %v771
  %v777 = vmax.f32 %v773, 0.0
  %v778 = vmax.f32 %v774, 0.0
  %v779 = vmax.f32 %v775, 0.0
  %v780 = vmax.f32 %v776, 0.0
  %v781 = vld [vmem:[%s8] sm:$0xff]
  %v782 = vld [vmem:[%s8 + $0x8] sm:$0xff]
  %v783 = vld [vmem:[%s8 + $0x10] sm:$0xff]
  %v784 = vld [vmem:[%s8 + $0x18] sm:$0xff]
  %v785 = vld [vmem:[%s8 + $0x20] sm:$0xff]
  %v786 = vld [vmem:[%s8 + $0x28] sm:$0xff]
  %v787 = vld [vmem:[%s8 + $0x30] sm:$0xff]
  %v788 = vld [vmem:[%s8 + $0x38] sm:$0xff]
  %v789 = vld [vmem:[%s8 + $0x40] sm:$0xff]
  %v790 = vld [vmem:[%s8 + $0x48] sm:$0xff]
  %v791 = vld [vmem:[%s8 + $0x50] sm:$0xff]
  %v792 = vld [vmem:[%s8 + $0x58] sm:$0xff]
  %v793 = vld [vmem:[%s8 + $0x60] sm:$0xff]
  %v794 = vld [vmem:[%s8 + $0x68] sm:$0xff]
  %v795 = vld [vmem:[%s8 + $0x70] sm:$0xff]
  %v796 = vld [vmem:[%s8 + $0x78] sm:$0xff]
  %797 = vmatprep.subr.mxu0 0.0
  %798 = vmatpush1.msra.mxu0 %v781
  %799 = vmatprep.subr.mxu0 0.0
  %800 = vmatpush1.msra.mxu0 %v782
  %801 = vmatprep.subr.mxu0 0.0
  %802 = vmatpush1.msra.mxu0 %v783
  %803 = vmatprep.subr.mxu0 0.0
  %804 = vmatpush1.msra.mxu0 %v784
  %805 = vmatprep.subr.mxu0 0.0
  %806 = vmatpush1.msra.mxu0 %v785
  %807 = vmatprep.subr.mxu0 0.0
  %808 = vmatpush1.msra.mxu0 %v786
  %809 = vmatprep.subr.mxu0 0.0
  %810 = vmatpush1.msra.mxu0 %v787
  %811 = vmatprep.subr.mxu0 0.0
  %812 = vmatpush1.msra.mxu0 %v788
  %813 = vmatprep.subr.mxu0 0.0
  %814 = vmatpush1.msra.mxu0 %v789
  %815 = vmatprep.subr.mxu0 0.0
  %816 = vmatpush1.msra.mxu0 %v790
  %817 = vmatprep.subr.mxu0 0.0
  %818 = vmatpush1.msra.mxu0 %v791
  %819 = vmatprep.subr.mxu0 0.0
  %820 = vmatpush1.msra.mxu0 %v792
  %821 = vmatprep.subr.mxu0 0.0
  %822 = vmatpush1.msra.mxu0 %v793
  %823 = vmatprep.subr.mxu0 0.0
  %824 = vmatpush1.msra.mxu0 %v794
  %825 = vmatprep.subr.mxu0 0.0
  %826 = vmatpush1.msra.mxu0 %v795
  %827 = vmatprep.subr.mxu0 0.0
  %828 = vmatpush1.msra.mxu0 %v796
  %829 = vmatprep.subr.mxu0 0.0
  %830 = vmatpush1.msra.mxu0 0.0
  %831 = vmatprep.subr.mxu0 0.0
  %832 = vmatpush1.msra.mxu0 0.0
  %833 = vmatprep.subr.mxu0 0.0
  %834 = vmatpush1.msra.mxu0 0.0
  %835 = vmatprep.subr.mxu0 0.0
  %836 = vmatpush1.msra.mxu0 0.0
  %837 = vmatprep.subr.mxu0 0.0
  %838 = vmatpush1.msra.mxu0 0.0
  %839 = vmatprep.subr.mxu0 0.0
  %840 = vmatpush1.msra.mxu0 0.0
  %841 = vmatprep.subr.mxu0 0.0
  %842 = vmatpush1.msra.mxu0 0.0
  %843 = vmatprep.subr.mxu0 0.0
  %844 = vmatpush1.msra.mxu0 0.0
  %845 = vmatprep.subr.mxu0 0.0
  %846 = vmatpush1.msra.mxu0 0.0
  %847 = vmatprep.subr.mxu0 0.0
  %848 = vmatpush1.msra.mxu0 0.0
  %849 = vmatprep.subr.mxu0 0.0
  %850 = vmatpush1.msra.mxu0 0.0
  %851 = vmatprep.subr.mxu0 0.0
  %852 = vmatpush1.msra.mxu0 0.0
  %853 = vmatprep.subr.mxu0 0.0
  %854 = vmatpush1.msra.mxu0 0.0
  %855 = vmatprep.subr.mxu0 0.0
  %856 = vmatpush1.msra.mxu0 0.0
  %857 = vmatprep.subr.mxu0 0.0
  %858 = vmatpush1.msra.mxu0 0.0
  %859 = vmatprep.subr.mxu0 0.0
  %860 = vmatpush1.msra.mxu0 0.0
  %861 = vmatprep.mubr.f32.mxu0 0.0
  %862 = vmatmul.mubr.f32.gmra.mrb[0].mxu0 %v777
  %v863 = vpop.f32.mrb[0].mxu0
  %v864 = vadd.f32 0.0, %v863
  %v865 = vpop.f32.mrb[0].mxu0
  %866 = vmatprep.mubr.f32.mxu0 0.0
  %867 = vmatmul.mubr.f32.gmra.mrb[0].mxu0 %v778
  %v868 = vpop.f32.mrb[0].mxu0
  %v869 = vadd.f32 0.0, %v868
  %v870 = vpop.f32.mrb[0].mxu0
  %871 = vmatprep.mubr.f32.mxu0 0.0
  %872 = vmatmul.mubr.f32.gmra.mrb[0].mxu0 %v779
  %v873 = vpop.f32.mrb[0].mxu0
  %v874 = vadd.f32 0.0, %v873
  %v875 = vpop.f32.mrb[0].mxu0
  %876 = vmatprep.mubr.f32.mxu0 0.0
  %877 = vmatmul.mubr.f32.gmra.mrb[0].mxu0 %v780
  %v878 = vpop.f32.mrb[0].mxu0
  %v879 = vadd.f32 0.0, %v878
  %v880 = vpop.f32.mrb[0].mxu0
  %881 = vdwg.mxu0
  %s882 = scalar_lea.vmem %s8, 128
  %v883 = vld [vmem:[%s882] sm:$0xff]
  %v884 = vld [vmem:[%s882 + $0x8] sm:$0xff]
  %v885 = vld [vmem:[%s882 + $0x10] sm:$0xff]
  %v886 = vld [vmem:[%s882 + $0x18] sm:$0xff]
  %v887 = vld [vmem:[%s882 + $0x20] sm:$0xff]
  %v888 = vld [vmem:[%s882 + $0x28] sm:$0xff]
  %v889 = vld [vmem:[%s882 + $0x30] sm:$0xff]
  %v890 = vld [vmem:[%s882 + $0x38] sm:$0xff]
  %v891 = vld [vmem:[%s882 + $0x40] sm:$0xff]
  %v892 = vld [vmem:[%s882 + $0x48] sm:$0xff]
  %v893 = vld [vmem:[%s882 + $0x50] sm:$0xff]
  %v894 = vld [vmem:[%s882 + $0x58] sm:$0xff]
  %v895 = vld [vmem:[%s882 + $0x60] sm:$0xff]
  %v896 = vld [vmem:[%s882 + $0x68] sm:$0xff]
  %v897 = vld [vmem:[%s882 + $0x70] sm:$0xff]
  %v898 = vld [vmem:[%s882 + $0x78] sm:$0xff]
  %s899 = scalar_lea.vmem %s8, 256
  %v900 = vld [vmem:[%s899] sm:$0xff]
  %v901 = vld [vmem:[%s899 + $0x8] sm:$0xff]
  %v902 = vld [vmem:[%s899 + $0x10] sm:$0xff]
  %v903 = vld [vmem:[%s899 + $0x18] sm:$0xff]
  %v904 = vld [vmem:[%s899 + $0x20] sm:$0xff]
  %v905 = vld [vmem:[%s899 + $0x28] sm:$0xff]
  %v906 = vld [vmem:[%s899 + $0x30] sm:$0xff]
  %v907 = vld [vmem:[%s899 + $0x38] sm:$0xff]
  %v908 = vld [vmem:[%s899 + $0x40] sm:$0xff]
  %v909 = vld [vmem:[%s899 + $0x48] sm:$0xff]
  %v910 = vld [vmem:[%s899 + $0x50] sm:$0xff]
  %v911 = vld [vmem:[%s899 + $0x58] sm:$0xff]
  %v912 = vld [vmem:[%s899 + $0x60] sm:$0xff]
  %v913 = vld [vmem:[%s899 + $0x68] sm:$0xff]
  %v914 = vld [vmem:[%s899 + $0x70] sm:$0xff]
  %v915 = vld [vmem:[%s899 + $0x78] sm:$0xff]
  %916 = vmatprep.subr.mxu0 0.0
  %917 = vmatpush1.msra.mxu0 %v900
  %918 = vmatprep.subr.mxu0 0.0
  %919 = vmatpush1.msra.mxu0 %v901
  %920 = vmatprep.subr.mxu0 0.0
  %921 = vmatpush1.msra.mxu0 %v902
  %922 = vmatprep.subr.mxu0 0.0
  %923 = vmatpush1.msra.mxu0 %v903
  %924 = vmatprep.subr.mxu0 0.0
  %925 = vmatpush1.msra.mxu0 %v904
  %926 = vmatprep.subr.mxu0 0.0
  %927 = vmatpush1.msra.mxu0 %v905
  %928 = vmatprep.subr.mxu0 0.0
  %929 = vmatpush1.msra.mxu0 %v906
  %930 = vmatprep.subr.mxu0 0.0
  %931 = vmatpush1.msra.mxu0 %v907
  %932 = vmatprep.subr.mxu0 0.0
  %933 = vmatpush1.msra.mxu0 %v908
  %934 = vmatprep.subr.mxu0 0.0
  %935 = vmatpush1.msra.mxu0 %v909
  %936 = vmatprep.subr.mxu0 0.0
  %937 = vmatpush1.msra.mxu0 %v910
  %938 = vmatprep.subr.mxu0 0.0
  %939 = vmatpush1.msra.mxu0 %v911
  %940 = vmatprep.subr.mxu0 0.0
  %941 = vmatpush1.msra.mxu0 %v912
  %942 = vmatprep.subr.mxu0 0.0
  %943 = vmatpush1.msra.mxu0 %v913
  %944 = vmatprep.subr.mxu0 0.0
  %945 = vmatpush1.msra.mxu0 %v914
  %946 = vmatprep.subr.mxu0 0.0
  %947 = vmatpush1.msra.mxu0 %v915
  %948 = vmatprep.subr.mxu0 0.0
  %949 = vmatpush1.msra.mxu0 0.0
  %950 = vmatprep.subr.mxu0 0.0
  %951 = vmatpush1.msra.mxu0 0.0
  %952 = vmatprep.subr.mxu0 0.0
  %953 = vmatpush1.msra.mxu0 0.0
  %954 = vmatprep.subr.mxu0 0.0
  %955 = vmatpush1.msra.mxu0 0.0
  %956 = vmatprep.subr.mxu0 0.0
  %957 = vmatpush1.msra.mxu0 0.0
  %958 = vmatprep.subr.mxu0 0.0
  %959 = vmatpush1.msra.mxu0 0.0
  %960 = vmatprep.subr.mxu0 0.0
  %961 = vmatpush1.msra.mxu0 0.0
  %962 = vmatprep.subr.mxu0 0.0
  %963 = vmatpush1.msra.mxu0 0.0
  %964 = vmatprep.subr.mxu0 0.0
  %965 = vmatpush1.msra.mxu0 0.0
  %966 = vmatprep.subr.mxu0 0.0
  %967 = vmatpush1.msra.mxu0 0.0
  %968 = vmatprep.subr.mxu0 0.0
  %969 = vmatpush1.msra.mxu0 0.0
  %970 = vmatprep.subr.mxu0 0.0
  %971 = vmatpush1.msra.mxu0 0.0
  %972 = vmatprep.subr.mxu0 0.0
  %973 = vmatpush1.msra.mxu0 0.0
  %974 = vmatprep.subr.mxu0 0.0
  %975 = vmatpush1.msra.mxu0 0.0
  %976 = vmatprep.subr.mxu0 0.0
  %977 = vmatpush1.msra.mxu0 0.0
  %978 = vmatprep.subr.mxu0 0.0
  %979 = vmatpush1.msra.mxu0 0.0
  %980 = vmatprep.mubr.f32.mxu0 0.0
  %981 = vmatmul.mubr.f32.gmra.mrb[0].mxu0 %v777
  %v982 = vpop.f32.mrb[0].mxu0
  %v983 = vadd.f32 0.0, %v982
  %v984 = vpop.f32.mrb[0].mxu0
  %985 = vmatprep.mubr.f32.mxu0 0.0
  %986 = vmatmul.mubr.f32.gmra.mrb[0].mxu0 %v778
  %v987 = vpop.f32.mrb[0].mxu0
  %v988 = vadd.f32 0.0, %v987
  %v989 = vpop.f32.mrb[0].mxu0
  %990 = vmatprep.mubr.f32.mxu0 0.0
  %991 = vmatmul.mubr.f32.gmra.mrb[0].mxu0 %v779
  %v992 = vpop.f32.mrb[0].mxu0
  %v993 = vadd.f32 0.0, %v992
  %v994 = vpop.f32.mrb[0].mxu0
  %995 = vmatprep.mubr.f32.mxu0 0.0
  %996 = vmatmul.mubr.f32.gmra.mrb[0].mxu0 %v780
  %v997 = vpop.f32.mrb[0].mxu0
  %v998 = vadd.f32 0.0, %v997
  %v999 = vpop.f32.mrb[0].mxu0
  %1000 = vdwg.mxu0
  %1001 = vmatprep.subr.mxu0 0.0
  %1002 = vmatpush1.msra.mxu0 %v864
  %1003 = vmatprep.subr.mxu0 0.0
  %1004 = vmatpush1.msra.mxu0 %v869
  %1005 = vmatprep.subr.mxu0 0.0
  %1006 = vmatpush1.msra.mxu0 %v874
  %1007 = vmatprep.subr.mxu0 0.0
  %1008 = vmatpush1.msra.mxu0 %v879
  %1009 = vmatprep.subr.mxu0 0.0
  %1010 = vmatpush1.msra.mxu0 0.0
  %1011 = vmatprep.subr.mxu0 0.0
  %1012 = vmatpush1.msra.mxu0 0.0
  %1013 = vmatprep.subr.mxu0 0.0
  %1014 = vmatpush1.msra.mxu0 0.0
  %1015 = vmatprep.subr.mxu0 0.0
  %1016 = vmatpush1.msra.mxu0 0.0
  %1017 = vmatprep.subr.mxu0 0.0
  %1018 = vmatpush1.msra.mxu0 0.0
  %1019 = vmatprep.subr.mxu0 0.0
  %1020 = vmatpush1.msra.mxu0 0.0
  %1021 = vmatprep.subr.mxu0 0.0
  %1022 = vmatpush1.msra.mxu0 0.0
  %1023 = vmatprep.subr.mxu0 0.0
  %1024 = vmatpush1.msra.mxu0 0.0
  %1025 = vmatprep.subr.mxu0 0.0
  %1026 = vmatpush1.msra.mxu0 0.0
  %1027 = vmatprep.subr.mxu0 0.0
  %1028 = vmatpush1.msra.mxu0 0.0
  %1029 = vmatprep.subr.mxu0 0.0
  %1030 = vmatpush1.msra.mxu0 0.0
  %1031 = vmatprep.subr.mxu0 0.0
  %1032 = vmatpush1.msra.mxu0 0.0
  %1033 = vmatprep.subr.mxu0 0.0
  %1034 = vmatpush1.msra.mxu0 0.0
  %1035 = vmatprep.subr.mxu0 0.0
  %1036 = vmatpush1.msra.mxu0 0.0
  %1037 = vmatprep.subr.mxu0 0.0
  %1038 = vmatpush1.msra.mxu0 0.0
  %1039 = vmatprep.subr.mxu0 0.0
  %1040 = vmatpush1.msra.mxu0 0.0
  %1041 = vmatprep.subr.mxu0 0.0
  %1042 = vmatpush1.msra.mxu0 0.0
  %1043 = vmatprep.subr.mxu0 0.0
  %1044 = vmatpush1.msra.mxu0 0.0
  %1045 = vmatprep.subr.mxu0 0.0
  %1046 = vmatpush1.msra.mxu0 0.0
  %1047 = vmatprep.subr.mxu0 0.0
  %1048 = vmatpush1.msra.mxu0 0.0
  %1049 = vmatprep.subr.mxu0 0.0
  %1050 = vmatpush1.msra.mxu0 0.0
  %1051 = vmatprep.subr.mxu0 0.0
  %1052 = vmatpush1.msra.mxu0 0.0
  %1053 = vmatprep.subr.mxu0 0.0
  %1054 = vmatpush1.msra.mxu0 0.0
  %1055 = vmatprep.subr.mxu0 0.0
  %1056 = vmatpush1.msra.mxu0 0.0
  %1057 = vmatprep.subr.mxu0 0.0
  %1058 = vmatpush1.msra.mxu0 0.0
  %1059 = vmatprep.subr.mxu0 0.0
  %1060 = vmatpush1.msra.mxu0 0.0
  %1061 = vmatprep.subr.mxu0 0.0
  %1062 = vmatpush1.msra.mxu0 0.0
  %1063 = vmatprep.subr.mxu0 0.0
  %1064 = vmatpush1.msra.mxu0 0.0
  %1065 = vmatprep.mubr.f32.mxu0 0.0
  %1066 = vmatmul.mubr.f32.gmra.mrb[0].mxu0 %v291
  %v1067 = vpop.f32.mrb[0].mxu0
  %v1068 = vadd.f32 0.0, %v1067
  %v1069 = vpop.f32.mrb[0].mxu0
  %1070 = vmatprep.mubr.f32.mxu0 0.0
  %1071 = vmatmul.mubr.f32.gmra.mrb[0].mxu0 %v294
  %v1072 = vpop.f32.mrb[0].mxu0
  %v1073 = vadd.f32 0.0, %v1072
  %v1074 = vpop.f32.mrb[0].mxu0
  %1075 = vmatprep.mubr.f32.mxu0 0.0
  %1076 = vmatmul.mubr.f32.gmra.mrb[0].mxu0 %v297
  %v1077 = vpop.f32.mrb[0].mxu0
  %v1078 = vadd.f32 0.0, %v1077
  %v1079 = vpop.f32.mrb[0].mxu0
  %1080 = vmatprep.mubr.f32.mxu0 0.0
  %1081 = vmatmul.mubr.f32.gmra.mrb[0].mxu0 %v300
  %v1082 = vpop.f32.mrb[0].mxu0
  %v1083 = vadd.f32 0.0, %v1082
  %v1084 = vpop.f32.mrb[0].mxu0
  %1085 = vdwg.mxu0
  %1086 = vmatprep.subr.mxu0 0.0
  %1087 = vmatpush1.msra.mxu0 %v883
  %1088 = vmatprep.subr.mxu0 0.0
  %1089 = vmatpush1.msra.mxu0 %v884
  %1090 = vmatprep.subr.mxu0 0.0
  %1091 = vmatpush1.msra.mxu0 %v885
  %1092 = vmatprep.subr.mxu0 0.0
  %1093 = vmatpush1.msra.mxu0 %v886
  %1094 = vmatprep.subr.mxu0 0.0
  %1095 = vmatpush1.msra.mxu0 %v887
  %1096 = vmatprep.subr.mxu0 0.0
  %1097 = vmatpush1.msra.mxu0 %v888
  %1098 = vmatprep.subr.mxu0 0.0
  %1099 = vmatpush1.msra.mxu0 %v889
  %1100 = vmatprep.subr.mxu0 0.0
  %1101 = vmatpush1.msra.mxu0 %v890
  %1102 = vmatprep.subr.mxu0 0.0
  %1103 = vmatpush1.msra.mxu0 %v891
  %1104 = vmatprep.subr.mxu0 0.0
  %1105 = vmatpush1.msra.mxu0 %v892
  %1106 = vmatprep.subr.mxu0 0.0
  %1107 = vmatpush1.msra.mxu0 %v893
  %1108 = vmatprep.subr.mxu0 0.0
  %1109 = vmatpush1.msra.mxu0 %v894
  %1110 = vmatprep.subr.mxu0 0.0
  %1111 = vmatpush1.msra.mxu0 %v895
  %1112 = vmatprep.subr.mxu0 0.0
  %1113 = vmatpush1.msra.mxu0 %v896
  %1114 = vmatprep.subr.mxu0 0.0
  %1115 = vmatpush1.msra.mxu0 %v897
  %1116 = vmatprep.subr.mxu0 0.0
  %1117 = vmatpush1.msra.mxu0 %v898
  %1118 = vmatprep.subr.mxu0 0.0
  %1119 = vmatpush1.msra.mxu0 0.0
  %1120 = vmatprep.subr.mxu0 0.0
  %1121 = vmatpush1.msra.mxu0 0.0
  %1122 = vmatprep.subr.mxu0 0.0
  %1123 = vmatpush1.msra.mxu0 0.0
  %1124 = vmatprep.subr.mxu0 0.0
  %1125 = vmatpush1.msra.mxu0 0.0
  %1126 = vmatprep.subr.mxu0 0.0
  %1127 = vmatpush1.msra.mxu0 0.0
  %1128 = vmatprep.subr.mxu0 0.0
  %1129 = vmatpush1.msra.mxu0 0.0
  %1130 = vmatprep.subr.mxu0 0.0
  %1131 = vmatpush1.msra.mxu0 0.0
  %1132 = vmatprep.subr.mxu0 0.0
  %1133 = vmatpush1.msra.mxu0 0.0
  %1134 = vmatprep.subr.mxu0 0.0
  %1135 = vmatpush1.msra.mxu0 0.0
  %1136 = vmatprep.subr.mxu0 0.0
  %1137 = vmatpush1.msra.mxu0 0.0
  %1138 = vmatprep.subr.mxu0 0.0
  %1139 = vmatpush1.msra.mxu0 0.0
  %1140 = vmatprep.subr.mxu0 0.0
  %1141 = vmatpush1.msra.mxu0 0.0
  %1142 = vmatprep.subr.mxu0 0.0
  %1143 = vmatpush1.msra.mxu0 0.0
  %1144 = vmatprep.subr.mxu0 0.0
  %1145 = vmatpush1.msra.mxu0 0.0
  %1146 = vmatprep.subr.mxu0 0.0
  %1147 = vmatpush1.msra.mxu0 0.0
  %1148 = vmatprep.subr.mxu0 0.0
  %1149 = vmatpush1.msra.mxu0 0.0
  %1150 = vmatprep.mubr.f32.mxu0 0.0
  %1151 = vmatmul.mubr.f32.gmra.mrb[0].mxu0 %v777
  %v1152 = vpop.f32.mrb[0].mxu0
  %v1153 = vadd.f32 %v1068, %v1152
  %v1154 = vpop.f32.mrb[0].mxu0
  %1155 = vmatprep.mubr.f32.mxu0 0.0
  %1156 = vmatmul.mubr.f32.gmra.mrb[0].mxu0 %v778
  %v1157 = vpop.f32.mrb[0].mxu0
  %v1158 = vadd.f32 %v1073, %v1157
  %v1159 = vpop.f32.mrb[0].mxu0
  %1160 = vmatprep.mubr.f32.mxu0 0.0
  %1161 = vmatmul.mubr.f32.gmra.mrb[0].mxu0 %v779
  %v1162 = vpop.f32.mrb[0].mxu0
  %v1163 = vadd.f32 %v1078, %v1162
  %v1164 = vpop.f32.mrb[0].mxu0
  %1165 = vmatprep.mubr.f32.mxu0 0.0
  %1166 = vmatmul.mubr.f32.gmra.mrb[0].mxu0 %v780
  %v1167 = vpop.f32.mrb[0].mxu0
  %v1168 = vadd.f32 %v1083, %v1167
  %v1169 = vpop.f32.mrb[0].mxu0
  %1170 = vdwg.mxu0
  %1171 = vmatprep.subr.mxu0 0.0
  %1172 = vmatpush1.msra.mxu0 %v983
  %1173 = vmatprep.subr.mxu0 0.0
  %1174 = vmatpush1.msra.mxu0 %v988
  %1175 = vmatprep.subr.mxu0 0.0
  %1176 = vmatpush1.msra.mxu0 %v993
  %1177 = vmatprep.subr.mxu0 0.0
  %1178 = vmatpush1.msra.mxu0 %v998
  %1179 = vmatprep.subr.mxu0 0.0
  %1180 = vmatpush1.msra.mxu0 0.0
  %1181 = vmatprep.subr.mxu0 0.0
  %1182 = vmatpush1.msra.mxu0 0.0
  %1183 = vmatprep.subr.mxu0 0.0
  %1184 = vmatpush1.msra.mxu0 0.0
  %1185 = vmatprep.subr.mxu0 0.0
  %1186 = vmatpush1.msra.mxu0 0.0
  %1187 = vmatprep.subr.mxu0 0.0
  %1188 = vmatpush1.msra.mxu0 0.0
  %1189 = vmatprep.subr.mxu0 0.0
  %1190 = vmatpush1.msra.mxu0 0.0
  %1191 = vmatprep.subr.mxu0 0.0
  %1192 = vmatpush1.msra.mxu0 0.0
  %1193 = vmatprep.subr.mxu0 0.0
  %1194 = vmatpush1.msra.mxu0 0.0
  %1195 = vmatprep.subr.mxu0 0.0
  %1196 = vmatpush1.msra.mxu0 0.0
  %1197 = vmatprep.subr.mxu0 0.0
  %1198 = vmatpush1.msra.mxu0 0.0
  %1199 = vmatprep.subr.mxu0 0.0
  %1200 = vmatpush1.msra.mxu0 0.0
  %1201 = vmatprep.subr.mxu0 0.0
  %1202 = vmatpush1.msra.mxu0 0.0
  %1203 = vmatprep.subr.mxu0 0.0
  %1204 = vmatpush1.msra.mxu0 0.0
  %1205 = vmatprep.subr.mxu0 0.0
  %1206 = vmatpush1.msra.mxu0 0.0
  %1207 = vmatprep.subr.mxu0 0.0
  %1208 = vmatpush1.msra.mxu0 0.0
  %1209 = vmatprep.subr.mxu0 0.0
  %1210 = vmatpush1.msra.mxu0 0.0
  %1211 = vmatprep.subr.mxu0 0.0
  %1212 = vmatpush1.msra.mxu0 0.0
  %1213 = vmatprep.subr.mxu0 0.0
  %1214 = vmatpush1.msra.mxu0 0.0
  %1215 = vmatprep.subr.mxu0 0.0
  %1216 = vmatpush1.msra.mxu0 0.0
  %1217 = vmatprep.subr.mxu0 0.0
  %1218 = vmatpush1.msra.mxu0 0.0
  %1219 = vmatprep.subr.mxu0 0.0
  %1220 = vmatpush1.msra.mxu0 0.0
  %1221 = vmatprep.subr.mxu0 0.0
  %1222 = vmatpush1.msra.mxu0 0.0
  %1223 = vmatprep.subr.mxu0 0.0
  %1224 = vmatpush1.msra.mxu0 0.0
  %1225 = vmatprep.subr.mxu0 0.0
  %1226 = vmatpush1.msra.mxu0 0.0
  %1227 = vmatprep.subr.mxu0 0.0
  %1228 = vmatpush1.msra.mxu0 0.0
  %1229 = vmatprep.subr.mxu0 0.0
  %1230 = vmatpush1.msra.mxu0 0.0
  %1231 = vmatprep.subr.mxu0 0.0
  %1232 = vmatpush1.msra.mxu0 0.0
  %1233 = vmatprep.subr.mxu0 0.0
  %1234 = vmatpush1.msra.mxu0 0.0
  %1235 = vmatprep.mubr.f32.mxu0 0.0
  %1236 = vmatmul.mubr.f32.gmra.mrb[0].mxu0 %v473
  %v1237 = vpop.f32.mrb[0].mxu0
  %v1238 = vadd.f32 0.0, %v1237
  %v1239 = vpop.f32.mrb[0].mxu0
  %1240 = vmatprep.mubr.f32.mxu0 0.0
  %1241 = vmatmul.mubr.f32.gmra.mrb[0].mxu0 %v476
  %v1242 = vpop.f32.mrb[0].mxu0
  %v1243 = vadd.f32 0.0, %v1242
  %v1244 = vpop.f32.mrb[0].mxu0
  %1245 = vmatprep.mubr.f32.mxu0 0.0
  %1246 = vmatmul.mubr.f32.gmra.mrb[0].mxu0 %v479
  %v1247 = vpop.f32.mrb[0].mxu0
  %v1248 = vadd.f32 0.0, %v1247
  %v1249 = vpop.f32.mrb[0].mxu0
  %1250 = vmatprep.mubr.f32.mxu0 0.0
  %1251 = vmatmul.mubr.f32.gmra.mrb[0].mxu0 %v482
  %v1252 = vpop.f32.mrb[0].mxu0
  %v1253 = vadd.f32 0.0, %v1252
  %v1254 = vpop.f32.mrb[0].mxu0
  %1255 = vdwg.mxu0
  %v1256 = vadd.f32 %v1153, %v1238
  %v1257 = vadd.f32 %v1158, %v1243
  %v1258 = vadd.f32 %v1163, %v1248
  %v1259 = vadd.f32 %v1168, %v1253
  %v1260 = vld [vmem:[%s9] sm:$0x1]
  %v1262 = vlaneseq
  %v1263 = vshrl.u32 %v1262, 7
  %v1264 = vsub.s32 0, %v1263
  %v1265 = vrot.slane %v1260, %v1264
  %v1267 = vadd.f32 %v1256, %v1265
  %v1268 = vadd.f32 %v1257, %v1265
  %v1269 = vadd.f32 %v1258, %v1265
  %v1270 = vadd.f32 %v1259, %v1265
  %v1271 = vadd.f32 %v1267, %v1268
  %v1272 = vadd.f32 %v1271, %v1269
  %v1273 = vadd.f32 %v1272, %v1270
  %v1274 = vrot.slane %v1273, 4
  %v1275 = vadd.f32 %v1273, %v1274
  %v1276 = vrot.slane %v1275, 2
  %v1277 = vadd.f32 %v1275, %v1276
  %v1278 = vrot.slane %v1277, 1
  %v1279 = vadd.f32 %v1277, %v1278
  %v1280 = vmul.f32 %v1267, %v1267
  %v1281 = vmul.f32 %v1268, %v1268
  %v1282 = vmul.f32 %v1269, %v1269
  %v1283 = vmul.f32 %v1270, %v1270
  %v1284 = vadd.f32 %v1280, %v1281
  %v1285 = vadd.f32 %v1284, %v1282
  %v1286 = vadd.f32 %v1285, %v1283
  %v1287 = vrot.slane %v1286, 4
  %v1288 = vadd.f32 %v1286, %v1287
  %v1289 = vrot.slane %v1288, 2
  %v1290 = vadd.f32 %v1288, %v1289
  %v1291 = vrot.slane %v1290, 1
  %v1292 = vadd.f32 %v1290, %v1291
  %1293 = vmatprep.subr.mxu0 0.0
  %1294 = vmatpush1.msra.mxu0 %v53
  %1295 = vmatprep.subr.mxu0 0.0
  %1296 = vmatpush1.msra.mxu0 %v54
  %1297 = vmatprep.subr.mxu0 0.0
  %1298 = vmatpush1.msra.mxu0 %v55
  %1299 = vmatprep.subr.mxu0 0.0
  %1300 = vmatpush1.msra.mxu0 %v56
  %1301 = vmatprep.subr.mxu0 0.0
  %1302 = vmatpush1.msra.mxu0 %v57
  %1303 = vmatprep.subr.mxu0 0.0
  %1304 = vmatpush1.msra.mxu0 %v58
  %1305 = vmatprep.subr.mxu0 0.0
  %1306 = vmatpush1.msra.mxu0 %v59
  %1307 = vmatprep.subr.mxu0 0.0
  %1308 = vmatpush1.msra.mxu0 %v60
  %1309 = vmatprep.subr.mxu0 0.0
  %1310 = vmatpush1.msra.mxu0 %v61
  %1311 = vmatprep.subr.mxu0 0.0
  %1312 = vmatpush1.msra.mxu0 %v62
  %1313 = vmatprep.subr.mxu0 0.0
  %1314 = vmatpush1.msra.mxu0 %v63
  %1315 = vmatprep.subr.mxu0 0.0
  %1316 = vmatpush1.msra.mxu0 %v64
  %1317 = vmatprep.subr.mxu0 0.0
  %1318 = vmatpush1.msra.mxu0 %v65
  %1319 = vmatprep.subr.mxu0 0.0
  %1320 = vmatpush1.msra.mxu0 %v66
  %1321 = vmatprep.subr.mxu0 0.0
  %1322 = vmatpush1.msra.mxu0 %v67
  %1323 = vmatprep.subr.mxu0 0.0
  %1324 = vmatpush1.msra.mxu0 %v68
  %1325 = vmatprep.subr.mxu0 0.0
  %1326 = vmatpush1.msra.mxu0 0.0
  %1327 = vmatprep.subr.mxu0 0.0
  %1328 = vmatpush1.msra.mxu0 0.0
  %1329 = vmatprep.subr.mxu0 0.0
  %1330 = vmatpush1.msra.mxu0 0.0
  %1331 = vmatprep.subr.mxu0 0.0
  %1332 = vmatpush1.msra.mxu0 0.0
  %1333 = vmatprep.subr.mxu0 0.0
  %1334 = vmatpush1.msra.mxu0 0.0
  %1335 = vmatprep.subr.mxu0 0.0
  %1336 = vmatpush1.msra.mxu0 0.0
  %1337 = vmatprep.subr.mxu0 0.0
  %1338 = vmatpush1.msra.mxu0 0.0
  %1339 = vmatprep.subr.mxu0 0.0
  %1340 = vmatpush1.msra.mxu0 0.0
  %1341 = vmatprep.subr.mxu0 0.0
  %1342 = vmatpush1.msra.mxu0 0.0
  %1343 = vmatprep.subr.mxu0 0.0
  %1344 = vmatpush1.msra.mxu0 0.0
  %1345 = vmatprep.subr.mxu0 0.0
  %1346 = vmatpush1.msra.mxu0 0.0
  %1347 = vmatprep.subr.mxu0 0.0
  %1348 = vmatpush1.msra.mxu0 0.0
  %1349 = vmatprep.subr.mxu0 0.0
  %1350 = vmatpush1.msra.mxu0 0.0
  %1351 = vmatprep.subr.mxu0 0.0
  %1352 = vmatpush1.msra.mxu0 0.0
  %1353 = vmatprep.subr.mxu0 0.0
  %1354 = vmatpush1.msra.mxu0 0.0
  %1355 = vmatprep.subr.mxu0 0.0
  %1356 = vmatpush1.msra.mxu0 0.0
  %1357 = vmatprep.mubr.f32.mxu0 0.0
  %1358 = vmatmul.mubr.f32.gmra.mrb[0].mxu0 %v1279
  %v1359 = vpop.f32.mrb[0].mxu0
  %v1360 = vadd.f32 0.0, %v1359
  %v1361 = vpop.f32.mrb[0].mxu0
  %1362 = vdwg.mxu0
  %v1363 = vmul.f32 %v1360, 0.001953125
  %1364 = vmatprep.subr.mxu0 0.0
  %1365 = vmatpush1.msra.mxu0 %v53
  %1366 = vmatprep.subr.mxu0 0.0
  %1367 = vmatpush1.msra.mxu0 %v54
  %1368 = vmatprep.subr.mxu0 0.0
  %1369 = vmatpush1.msra.mxu0 %v55
  %1370 = vmatprep.subr.mxu0 0.0
  %1371 = vmatpush1.msra.mxu0 %v56
  %1372 = vmatprep.subr.mxu0 0.0
  %1373 = vmatpush1.msra.mxu0 %v57
  %1374 = vmatprep.subr.mxu0 0.0
  %1375 = vmatpush1.msra.mxu0 %v58
  %1376 = vmatprep.subr.mxu0 0.0
  %1377 = vmatpush1.msra.mxu0 %v59
  %1378 = vmatprep.subr.mxu0 0.0
  %1379 = vmatpush1.msra.mxu0 %v60
  %1380 = vmatprep.subr.mxu0 0.0
  %1381 = vmatpush1.msra.mxu0 %v61
  %1382 = vmatprep.subr.mxu0 0.0
  %1383 = vmatpush1.msra.mxu0 %v62
  %1384 = vmatprep.subr.mxu0 0.0
  %1385 = vmatpush1.msra.mxu0 %v63
  %1386 = vmatprep.subr.mxu0 0.0
  %1387 = vmatpush1.msra.mxu0 %v64
  %1388 = vmatprep.subr.mxu0 0.0
  %1389 = vmatpush1.msra.mxu0 %v65
  %1390 = vmatprep.subr.mxu0 0.0
  %1391 = vmatpush1.msra.mxu0 %v66
  %1392 = vmatprep.subr.mxu0 0.0
  %1393 = vmatpush1.msra.mxu0 %v67
  %1394 = vmatprep.subr.mxu0 0.0
  %1395 = vmatpush1.msra.mxu0 %v68
  %1396 = vmatprep.subr.mxu0 0.0
  %1397 = vmatpush1.msra.mxu0 0.0
  %1398 = vmatprep.subr.mxu0 0.0
  %1399 = vmatpush1.msra.mxu0 0.0
  %1400 = vmatprep.subr.mxu0 0.0
  %1401 = vmatpush1.msra.mxu0 0.0
  %1402 = vmatprep.subr.mxu0 0.0
  %1403 = vmatpush1.msra.mxu0 0.0
  %1404 = vmatprep.subr.mxu0 0.0
  %1405 = vmatpush1.msra.mxu0 0.0
  %1406 = vmatprep.subr.mxu0 0.0
  %1407 = vmatpush1.msra.mxu0 0.0
  %1408 = vmatprep.subr.mxu0 0.0
  %1409 = vmatpush1.msra.mxu0 0.0
  %1410 = vmatprep.subr.mxu0 0.0
  %1411 = vmatpush1.msra.mxu0 0.0
  %1412 = vmatprep.subr.mxu0 0.0
  %1413 = vmatpush1.msra.mxu0 0.0
  %1414 = vmatprep.subr.mxu0 0.0
  %1415 = vmatpush1.msra.mxu0 0.0
  %1416 = vmatprep.subr.mxu0 0.0
  %1417 = vmatpush1.msra.mxu0 0.0
  %1418 = vmatprep.subr.mxu0 0.0
  %1419 = vmatpush1.msra.mxu0 0.0
  %1420 = vmatprep.subr.mxu0 0.0
  %1421 = vmatpush1.msra.mxu0 0.0
  %1422 = vmatprep.subr.mxu0 0.0
  %1423 = vmatpush1.msra.mxu0 0.0
  %1424 = vmatprep.subr.mxu0 0.0
  %1425 = vmatpush1.msra.mxu0 0.0
  %1426 = vmatprep.subr.mxu0 0.0
  %1427 = vmatpush1.msra.mxu0 0.0
  %1428 = vmatprep.mubr.f32.mxu0 0.0
  %1429 = vmatmul.mubr.f32.gmra.mrb[0].mxu0 %v1292
  %v1430 = vpop.f32.mrb[0].mxu0
  %v1431 = vadd.f32 0.0, %v1430
  %v1432 = vpop.f32.mrb[0].mxu0
  %1433 = vdwg.mxu0
  %v1434 = vmul.f32 %v1431, 0.001953125
  %v1435 = vmul.f32 %v1363, %v1363
  %v1436 = vsub.f32 %v1434, %v1435
  %v1437 = vadd.f32 %v1436, 1e-05
  %v1438 = vrsqrt.pop %v1437
  %v1439 = vld [vmem:[%s10] sm:$0x1]
  %v1440 = vmul.f32 %v1439, %v1438
  %v1441 = vld [vmem:[%s11] sm:$0x1]
  %v1442 = vmul.f32 %v1363, %v1440
  %v1443 = vsub.f32 %v1441, %v1442
  %v1445 = vlaneseq
  %v1446 = vshrl.u32 %v1445, 7
  %v1447 = vsub.s32 0, %v1446
  %v1448 = vrot.slane %v1440, %v1447
  %v1450 = vmul.f32 %v1267, %v1448
  %v1451 = vmul.f32 %v1268, %v1448
  %v1452 = vmul.f32 %v1269, %v1448
  %v1453 = vmul.f32 %v1270, %v1448
  %v1455 = vlaneseq
  %v1456 = vshrl.u32 %v1455, 7
  %v1457 = vsub.s32 0, %v1456
  %v1458 = vrot.slane %v1443, %v1457
  %v1460 = vadd.f32 %v1450, %v1458
  %v1461 = vadd.f32 %v1451, %v1458
  %v1462 = vadd.f32 %v1452, %v1458
  %v1463 = vadd.f32 %v1453, %v1458
  %v1464 = vadd.f32 %v1460, %v41
  %v1465 = vadd.f32 %v1461, %v42
  %v1466 = vadd.f32 %v1462, %v43
  %v1467 = vadd.f32 %v1463, %v44
  %v1468 = vmax.f32 %v1464, 0.0
  %v1469 = vmax.f32 %v1465, 0.0
  %v1470 = vmax.f32 %v1466, 0.0
  %v1471 = vmax.f32 %v1467, 0.0
  %1472 = vst [vmem:[%s12] sm:$0xff] %v1468
  %1473 = vst [vmem:[%s12 + $0x8] sm:$0xff] %v1469
  %1474 = vst [vmem:[%s12 + $0x10] sm:$0xff] %v1470
  %1475 = vst [vmem:[%s12 + $0x18] sm:$0xff] %v1471
  // Predicated region
  $region50: #{block_forward.1} parent=0 // pred_check
    _
  $region51: #{block_forward.1} parent=0 // pred_check_branch
    %1477 = sbr.rel (0) target = $region53
  $region52: #{block_forward.1} parent=0 // pred_region
    _
  $region53: #{block_forward.1} parent=0 // pred_fallthru
    _
  // Predicated region
  $region54: #{block_forward.1} parent=0 // pred_check
    _
  $region55: #{block_forward.1} parent=0 // pred_check_branch
    %1479 = sbr.rel (0) target = $region57
  $region56: #{block_forward.1} parent=0 // pred_region
    _
  $region57: #{block_forward.1} parent=0 // pred_fallthru
    _

</llo_original>
